<compile_context>
chip_gen: v7x
topology: tpu7x:2x2x1
jax: 0.10.0
libtpu: 0.0.40
codegen_flags: <defaults>
</compile_context>

<pallas_src>
import functools
import math

import jax
import jax.numpy as jnp
from jax.experimental import pallas as pl
from jax.experimental.pallas import tpu as pltpu


# --------------------------------------------------------------------------
# In-kernel helpers (f32 math)
# --------------------------------------------------------------------------
def _layernorm(x, g, b, eps=1e-5):
    # Single-pass statistics: one lane-reduction pair instead of two passes.
    m = jnp.mean(x, axis=-1, keepdims=True)
    ms = jnp.mean(x * x, axis=-1, keepdims=True)
    var = ms - m * m
    return (x - m) * jax.lax.rsqrt(var + eps) * g + b


def _erf(x):
    # Abramowitz & Stegun 7.1.26 polynomial (|err| < 1.5e-7): matches the
    # exact-erf PyTorch nn.GELU() to f32 precision using only exp/mul/add.
    a1, a2, a3, a4, a5 = (0.254829592, -0.284496736, 1.421413741,
                          -1.453152027, 1.061405429)
    p = 0.3275911
    sgn = jnp.where(x >= 0.0, 1.0, -1.0)
    ax = jnp.abs(x)
    t = 1.0 / (1.0 + p * ax)
    poly = ((((a5 * t + a4) * t + a3) * t + a2) * t + a1) * t
    return sgn * (1.0 - poly * jnp.exp(-ax * ax))


def _gelu(x):
    return 0.5 * x * (1.0 + _erf(x * 0.7071067811865475))


# --------------------------------------------------------------------------
# Kernel
# --------------------------------------------------------------------------
def encoder_kernel(
    xq_ref, xkv_ref,
    ln1_g_ref, ln1_b_ref,
    wq_ref, bq_ref, wk_ref, bk_ref, wv_ref, bv_ref,
    wo_ref, bo_ref,
    ln2_g_ref, ln2_b_ref,
    wfc1_ref, bfc1_ref, wfc2_ref, bfc2_ref,
    o_ref,
    *, num_heads,
):
    f32 = jnp.float32
    bf16 = jnp.bfloat16
    H = num_heads

    xq = xq_ref[...].astype(f32)          # (TQ, E) query rows of this step
    xkv = xkv_ref[...].astype(f32)        # (S,  E) full sequence (keys/vals)
    TQ, E = xq.shape
    S = xkv.shape[0]
    hd = wq_ref.shape[-1]
    scale = 1.0 / math.sqrt(hd)

    # ---- LN1 (f32 math; bf16 only feeds the MXU) -------------------------
    g1, be1 = ln1_g_ref[...], ln1_b_ref[...]
    xq_n = _layernorm(xq, g1, be1).astype(bf16)
    xkv_n = _layernorm(xkv, g1, be1).astype(bf16)

    # ---- Multi-head self-attention, heads batched via einsum -------------
    # Activations are broadcast over a leading head axis and the projection
    # weights are stored head-major (H, E, hd), so every contraction below is
    # a canonical batched matmul: no lane slices, no .T, no concatenate.
    xq_b = jnp.broadcast_to(xq_n, (H, TQ, E))
    xkv_b = jnp.broadcast_to(xkv_n, (H, S, E))

    q = jnp.einsum('hqe,hed->hqd', xq_b, wq_ref[...],
                   preferred_element_type=f32) + bq_ref[...]      # (H,TQ,hd)
    k = jnp.einsum('hke,hed->hkd', xkv_b, wk_ref[...],
                   preferred_element_type=f32) + bk_ref[...]      # (H,S,hd)
    v = jnp.einsum('hke,hed->hkd', xkv_b, wv_ref[...],
                   preferred_element_type=f32) + bv_ref[...]      # (H,S,hd)

    s = jnp.einsum('hqd,hkd->hqk', q.astype(bf16), k.astype(bf16),
                   preferred_element_type=f32) * scale            # (H,TQ,S)
    s = s - jnp.max(s, axis=-1, keepdims=True)
    p = jnp.exp(s)
    p = p * pl.reciprocal(jnp.sum(p, axis=-1, keepdims=True), approx=True)

    ctx = jnp.einsum('hqk,hkd->hqd', p.astype(bf16), v.astype(bf16),
                     preferred_element_type=f32)                  # (H,TQ,hd)

    # Output projection with head-major weights (H, hd, E); f32 head-sum.
    attn = jnp.einsum('hqd,hde->hqe', ctx.astype(bf16), wo_ref[...],
                      preferred_element_type=f32)                 # (H,TQ,E)
    attn = jnp.sum(attn, axis=0) + bo_ref[...]                    # (TQ, E)

    x1 = xq + attn                                                # residual 1

    # ---- LN2 + MLP --------------------------------------------------------
    xn2 = _layernorm(x1, ln2_g_ref[...], ln2_b_ref[...]).astype(bf16)
    hid = jnp.dot(xn2, wfc1_ref[...],
                  preferred_element_type=f32) + bfc1_ref[...]
    hid = _gelu(hid)
    y = jnp.dot(hid.astype(bf16), wfc2_ref[...],
                preferred_element_type=f32) + bfc2_ref[...]

    o_ref[...] = (x1 + y).astype(o_ref.dtype)                     # residual 2


# --------------------------------------------------------------------------
# Wrapper
# --------------------------------------------------------------------------
def _const_index_map(*_args, nd):
    return (0,) * nd


def transformer_encoder(x, params, num_heads):
    """ViT TransformerEncoder block forward (inference; dropout = identity)."""
    B, S, E = x.shape
    H = num_heads
    assert E % H == 0, "embed_dim must be divisible by num_heads"
    hd = E // H
    D = params["w1"].shape[1]
    bf16 = jnp.bfloat16

    # Head-major, bf16 weight layouts (plain-JAX plumbing outside the kernel).
    def split_heads_in(w):                # (E, E) -> (H, E, hd)
        return w.reshape(E, H, hd).transpose(1, 0, 2).astype(bf16)

    weights = [
        params["ln1_g"], params["ln1_b"],
        split_heads_in(params["wq"]), params["bq"].reshape(H, 1, hd),
        split_heads_in(params["wk"]), params["bk"].reshape(H, 1, hd),
        split_heads_in(params["wv"]), params["bv"].reshape(H, 1, hd),
        params["wo"].reshape(H, hd, E).astype(bf16), params["bo"],
        params["ln2_g"], params["ln2_b"],
        params["w1"].astype(bf16), params["b1"],
        params["w2"].astype(bf16), params["b2"],
    ]

    # Query-row tiling adds a second grid axis (pipelining + megacore);
    # K/V see the full sequence each step.
    # TODO(synk): for long S (>~512) switch to a flash-style KV grid axis with
    # online softmax instead of materializing the (H, TQ, S) score tensor.
    TQ = 128 if S % 128 == 0 else S
    nq = S // TQ
    grid = (B, nq)

    xq_spec = pl.BlockSpec((None, TQ, E), lambda b, q: (b, q, 0))
    xkv_spec = pl.BlockSpec((None, S, E), lambda b, q: (b, 0, 0))
    out_spec = pl.BlockSpec((None, TQ, E), lambda b, q: (b, q, 0))
    w_specs = [pl.BlockSpec(w.shape, functools.partial(_const_index_map, nd=w.ndim))
               for w in weights]

    flops = int(B * (8 * S * E * E + 4 * S * S * E + 4 * S * E * D))
    transcendentals = int(B * (H * S * S + S * D))
    bytes_accessed = int(3 * x.size * x.dtype.itemsize
                         + B * nq * sum(int(w.size) * w.dtype.itemsize
                                        for w in weights))

    kernel = functools.partial(encoder_kernel, num_heads=H)

    return pl.pallas_call(
        kernel,
        out_shape=jax.ShapeDtypeStruct((B, S, E), x.dtype),
        grid=grid,
        in_specs=[xq_spec, xkv_spec] + w_specs,
        out_specs=out_spec,
        compiler_params=pltpu.CompilerParams(
            dimension_semantics=("parallel", "parallel"),
            vmem_limit_bytes=64 * 1024 * 1024),
        cost_estimate=pl.CostEstimate(flops=flops,
                                      transcendentals=transcendentals,
                                      bytes_accessed=bytes_accessed),
    )(x, x, *weights)


# --------------------------------------------------------------------------
# Params + pure-JAX reference (for a correctness check)
# --------------------------------------------------------------------------
def init_params(key, embed_dim, hidden_dim):
    E, D = embed_dim, hidden_dim
    ks = jax.random.split(key, 12)
    s = 0.02
    f32 = jnp.float32
    return dict(
        ln1_g=jnp.ones((1, E), f32),
        ln1_b=jnp.zeros((1, E), f32),
        wq=s * jax.random.normal(ks[0], (E, E), f32),
        bq=s * jax.random.normal(ks[1], (1, E), f32),
        wk=s * jax.random.normal(ks[2], (E, E), f32),
        bk=s * jax.random.normal(ks[3], (1, E), f32),
        wv=s * jax.random.normal(ks[4], (E, E), f32),
        bv=s * jax.random.normal(ks[5], (1, E), f32),
        wo=s * jax.random.normal(ks[6], (E, E), f32),
        bo=s * jax.random.normal(ks[7], (1, E), f32),
        ln2_g=jnp.ones((1, E), f32),
        ln2_b=jnp.zeros((1, E), f32),
        w1=s * jax.random.normal(ks[8], (E, D), f32),
        b1=s * jax.random.normal(ks[9], (1, D), f32),
        w2=s * jax.random.normal(ks[10], (D, E), f32),
        b2=s * jax.random.normal(ks[11], (1, E), f32),
    )


def _reference(x, params, num_heads):
    B, S, E = x.shape
    H = num_heads
    hd = E // H

    def ln(v, g, b):
        m = v.mean(-1, keepdims=True)
        var = ((v - m) ** 2).mean(-1, keepdims=True)
        return (v - m) / jnp.sqrt(var + 1e-5) * g + b

    xn = ln(x, params["ln1_g"], params["ln1_b"])
    q = (xn @ params["wq"] + params["bq"]).reshape(B, S, H, hd).transpose(0, 2, 1, 3)
    k = (xn @ params["wk"] + params["bk"]).reshape(B, S, H, hd).transpose(0, 2, 1, 3)
    v = (xn @ params["wv"] + params["bv"]).reshape(B, S, H, hd).transpose(0, 2, 1, 3)
    s = (q @ jnp.swapaxes(k, -1, -2)) / jnp.sqrt(jnp.float32(hd))
    p = jax.nn.softmax(s, axis=-1)
    ctx = (p @ v).transpose(0, 2, 1, 3).reshape(B, S, E)
    x = x + ctx @ params["wo"] + params["bo"]
    xn2 = ln(x, params["ln2_g"], params["ln2_b"])
    h = xn2 @ params["w1"] + params["b1"]
    h = 0.5 * h * (1.0 + jax.scipy.special.erf(h / jnp.sqrt(2.0)))
    return x + h @ params["w2"] + params["b2"]


if __name__ == "__main__":
    B, S, E, H, D = 2, 8, 32, 4, 64   # batch, seq, embed_dim, heads, hidden_dim

    key = jax.random.PRNGKey(0)
    kx, kp = jax.random.split(key)
    x = jax.random.normal(kx, (B, S, E), jnp.float32)
    params = init_params(kp, E, D)

    out = transformer_encoder(x, params, num_heads=H)
    out = jax.block_until_ready(out)
    assert out.shape == (B, S, E) and out.dtype == x.dtype
    assert bool(jnp.all(jnp.isfinite(out)))

    ref = _reference(x, params, num_heads=H)
    max_err = float(jnp.max(jnp.abs(out - ref)))
    assert jnp.allclose(out, ref, atol=2e-2, rtol=2e-2), max_err

    print("KERNEL_OK")
</pallas_src>

<mosaic_0001>
module attributes {stable_mosaic.version = 11 : i64} {
  func.func @encoder_kernel(%arg0: i32, %arg1: i32, %arg2: memref<1x8x32xf32, #tpu.memory_space<vmem>>, %arg3: memref<1x8x32xf32, #tpu.memory_space<vmem>>, %arg4: memref<1x32xf32, #tpu.memory_space<vmem>>, %arg5: memref<1x32xf32, #tpu.memory_space<vmem>>, %arg6: memref<4x32x8xbf16, #tpu.memory_space<vmem>>, %arg7: memref<4x1x8xf32, #tpu.memory_space<vmem>>, %arg8: memref<4x32x8xbf16, #tpu.memory_space<vmem>>, %arg9: memref<4x1x8xf32, #tpu.memory_space<vmem>>, %arg10: memref<4x32x8xbf16, #tpu.memory_space<vmem>>, %arg11: memref<4x1x8xf32, #tpu.memory_space<vmem>>, %arg12: memref<4x8x32xbf16, #tpu.memory_space<vmem>>, %arg13: memref<1x32xf32, #tpu.memory_space<vmem>>, %arg14: memref<1x32xf32, #tpu.memory_space<vmem>>, %arg15: memref<1x32xf32, #tpu.memory_space<vmem>>, %arg16: memref<32x64xbf16, #tpu.memory_space<vmem>>, %arg17: memref<1x64xf32, #tpu.memory_space<vmem>>, %arg18: memref<64x32xbf16, #tpu.memory_space<vmem>>, %arg19: memref<1x32xf32, #tpu.memory_space<vmem>>, %arg20: memref<1x8x32xf32, #tpu.memory_space<vmem>>) attributes {dimension_semantics = [#tpu.dimension_semantics<parallel>, #tpu.dimension_semantics<parallel>], iteration_bounds = array<i64: 2, 1>, scalar_prefetch = 0 : i64, scratch_operands = 0 : i64, tpu.core_type = #tpu.core_type<tc>, window_params = [{transform_indices = @transform_0, window_bounds = array<i64: 1, 8, 32>}, {transform_indices = @transform_1, window_bounds = array<i64: 1, 8, 32>}, {pipeline_mode = #tpu.pipeline_mode<synchronous>, transform_indices = @transform_2, window_bounds = array<i64: 1, 32>}, {pipeline_mode = #tpu.pipeline_mode<synchronous>, transform_indices = @transform_3, window_bounds = array<i64: 1, 32>}, {pipeline_mode = #tpu.pipeline_mode<synchronous>, transform_indices = @transform_4, window_bounds = array<i64: 4, 32, 8>}, {pipeline_mode = #tpu.pipeline_mode<synchronous>, transform_indices = @transform_5, window_bounds = array<i64: 4, 1, 8>}, {pipeline_mode = #tpu.pipeline_mode<synchronous>, transform_indices = @transform_6, window_bounds = array<i64: 4, 32, 8>}, {pipeline_mode = #tpu.pipeline_mode<synchronous>, transform_indices = @transform_7, window_bounds = array<i64: 4, 1, 8>}, {pipeline_mode = #tpu.pipeline_mode<synchronous>, transform_indices = @transform_8, window_bounds = array<i64: 4, 32, 8>}, {pipeline_mode = #tpu.pipeline_mode<synchronous>, transform_indices = @transform_9, window_bounds = array<i64: 4, 1, 8>}, {pipeline_mode = #tpu.pipeline_mode<synchronous>, transform_indices = @transform_10, window_bounds = array<i64: 4, 8, 32>}, {pipeline_mode = #tpu.pipeline_mode<synchronous>, transform_indices = @transform_11, window_bounds = array<i64: 1, 32>}, {pipeline_mode = #tpu.pipeline_mode<synchronous>, transform_indices = @transform_12, window_bounds = array<i64: 1, 32>}, {pipeline_mode = #tpu.pipeline_mode<synchronous>, transform_indices = @transform_13, window_bounds = array<i64: 1, 32>}, {pipeline_mode = #tpu.pipeline_mode<synchronous>, transform_indices = @transform_14, window_bounds = array<i64: 32, 64>}, {pipeline_mode = #tpu.pipeline_mode<synchronous>, transform_indices = @transform_15, window_bounds = array<i64: 1, 64>}, {pipeline_mode = #tpu.pipeline_mode<synchronous>, transform_indices = @transform_16, window_bounds = array<i64: 64, 32>}, {pipeline_mode = #tpu.pipeline_mode<synchronous>, transform_indices = @transform_17, window_bounds = array<i64: 1, 32>}, {transform_indices = @transform_18, window_bounds = array<i64: 1, 8, 32>}]} {
    %c0 = arith.constant 0 : index
    %c0_0 = arith.constant 0 : index
    %c0_1 = arith.constant 0 : index
    %0 = vector.load %arg2[%c0, %c0_0, %c0_1] : memref<1x8x32xf32, #tpu.memory_space<vmem>>, vector<1x8x32xf32>
    %1 = vector.shape_cast %0 : vector<1x8x32xf32> to vector<8x32xf32>
    %c0_2 = arith.constant 0 : index
    %c0_3 = arith.constant 0 : index
    %c0_4 = arith.constant 0 : index
    %2 = vector.load %arg3[%c0_2, %c0_3, %c0_4] : memref<1x8x32xf32, #tpu.memory_space<vmem>>, vector<1x8x32xf32>
    %3 = vector.shape_cast %2 : vector<1x8x32xf32> to vector<8x32xf32>
    %c0_5 = arith.constant 0 : index
    %c0_6 = arith.constant 0 : index
    %4 = vector.load %arg4[%c0_5, %c0_6] : memref<1x32xf32, #tpu.memory_space<vmem>>, vector<1x32xf32>
    %c0_7 = arith.constant 0 : index
    %c0_8 = arith.constant 0 : index
    %5 = vector.load %arg5[%c0_7, %c0_8] : memref<1x32xf32, #tpu.memory_space<vmem>>, vector<1x32xf32>
    %cst = arith.constant dense<0.000000e+00> : vector<8xf32>
    %6 = vector.multi_reduction <add>, %1, %cst [1] : vector<8x32xf32> to vector<8xf32>
    %7 = vector.shape_cast %6 : vector<8xf32> to vector<8x1xf32>
    %cst_9 = arith.constant 3.200000e+01 : f32
    %8 = vector.broadcast %cst_9 : f32 to vector<8x1xf32>
    %9 = arith.divf %7, %8 : vector<8x1xf32>
    %10 = arith.mulf %1, %1 : vector<8x32xf32>
    %cst_10 = arith.constant dense<0.000000e+00> : vector<8xf32>
    %11 = vector.multi_reduction <add>, %10, %cst_10 [1] : vector<8x32xf32> to vector<8xf32>
    %12 = vector.shape_cast %11 : vector<8xf32> to vector<8x1xf32>
    %cst_11 = arith.constant 3.200000e+01 : f32
    %13 = vector.broadcast %cst_11 : f32 to vector<8x1xf32>
    %14 = arith.divf %12, %13 : vector<8x1xf32>
    %15 = arith.mulf %9, %9 : vector<8x1xf32>
    %16 = arith.subf %14, %15 : vector<8x1xf32>
    %17 = vector.broadcast %9 : vector<8x1xf32> to vector<8x32xf32>
    %18 = arith.subf %1, %17 : vector<8x32xf32>
    %cst_12 = arith.constant 9.99999974E-6 : f32
    %19 = vector.broadcast %cst_12 : f32 to vector<8x1xf32>
    %20 = arith.addf %16, %19 : vector<8x1xf32>
    %21 = math.rsqrt %20 : vector<8x1xf32>
    %22 = vector.broadcast %21 : vector<8x1xf32> to vector<8x32xf32>
    %23 = arith.mulf %18, %22 : vector<8x32xf32>
    %24 = vector.broadcast %4 : vector<1x32xf32> to vector<8x32xf32>
    %25 = arith.mulf %23, %24 : vector<8x32xf32>
    %26 = vector.broadcast %5 : vector<1x32xf32> to vector<8x32xf32>
    %27 = arith.addf %25, %26 : vector<8x32xf32>
    %28 = arith.truncf %27 : vector<8x32xf32> to vector<8x32xbf16>
    %cst_13 = arith.constant dense<0.000000e+00> : vector<8xf32>
    %29 = vector.multi_reduction <add>, %3, %cst_13 [1] : vector<8x32xf32> to vector<8xf32>
    %30 = vector.shape_cast %29 : vector<8xf32> to vector<8x1xf32>
    %cst_14 = arith.constant 3.200000e+01 : f32
    %31 = vector.broadcast %cst_14 : f32 to vector<8x1xf32>
    %32 = arith.divf %30, %31 : vector<8x1xf32>
    %33 = arith.mulf %3, %3 : vector<8x32xf32>
    %cst_15 = arith.constant dense<0.000000e+00> : vector<8xf32>
    %34 = vector.multi_reduction <add>, %33, %cst_15 [1] : vector<8x32xf32> to vector<8xf32>
    %35 = vector.shape_cast %34 : vector<8xf32> to vector<8x1xf32>
    %cst_16 = arith.constant 3.200000e+01 : f32
    %36 = vector.broadcast %cst_16 : f32 to vector<8x1xf32>
    %37 = arith.divf %35, %36 : vector<8x1xf32>
    %38 = arith.mulf %32, %32 : vector<8x1xf32>
    %39 = arith.subf %37, %38 : vector<8x1xf32>
    %40 = vector.broadcast %32 : vector<8x1xf32> to vector<8x32xf32>
    %41 = arith.subf %3, %40 : vector<8x32xf32>
    %cst_17 = arith.constant 9.99999974E-6 : f32
    %42 = vector.broadcast %cst_17 : f32 to vector<8x1xf32>
    %43 = arith.addf %39, %42 : vector<8x1xf32>
    %44 = math.rsqrt %43 : vector<8x1xf32>
    %45 = vector.broadcast %44 : vector<8x1xf32> to vector<8x32xf32>
    %46 = arith.mulf %41, %45 : vector<8x32xf32>
    %47 = vector.broadcast %4 : vector<1x32xf32> to vector<8x32xf32>
    %48 = arith.mulf %46, %47 : vector<8x32xf32>
    %49 = vector.broadcast %5 : vector<1x32xf32> to vector<8x32xf32>
    %50 = arith.addf %48, %49 : vector<8x32xf32>
    %51 = arith.truncf %50 : vector<8x32xf32> to vector<8x32xbf16>
    %52 = vector.shape_cast %28 : vector<8x32xbf16> to vector<1x8x32xbf16>
    %53 = vector.broadcast %52 : vector<1x8x32xbf16> to vector<4x8x32xbf16>
    %54 = vector.shape_cast %51 : vector<8x32xbf16> to vector<1x8x32xbf16>
    %55 = vector.broadcast %54 : vector<1x8x32xbf16> to vector<4x8x32xbf16>
    %c0_18 = arith.constant 0 : index
    %c0_19 = arith.constant 0 : index
    %c0_20 = arith.constant 0 : index
    %56 = vector.load %arg6[%c0_18, %c0_19, %c0_20] : memref<4x32x8xbf16, #tpu.memory_space<vmem>>, vector<4x32x8xbf16>
    "tpu.trace_start"() <{level = 10 : i32, message = "hqe,hed->hqd"}> : () -> ()
    %cst_21 = arith.constant dense<0.000000e+00> : vector<4x8x8xf32>
    %57 = tpu.matmul %53, %56, %cst_21 {dimension_numbers = #tpu.dot_dimension_numbers<[2], [1], [1], [2], [0, 0, 0, 1, 1, 2], [0], [0]>} : vector<4x8x32xbf16>, vector<4x32x8xbf16>, vector<4x8x8xf32> -> vector<4x8x8xf32>
    "tpu.trace_stop"() : () -> ()
    %c0_22 = arith.constant 0 : index
    %c0_23 = arith.constant 0 : index
    %c0_24 = arith.constant 0 : index
    %58 = vector.load %arg7[%c0_22, %c0_23, %c0_24] : memref<4x1x8xf32, #tpu.memory_space<vmem>>, vector<4x1x8xf32>
    %59 = vector.broadcast %58 : vector<4x1x8xf32> to vector<4x8x8xf32>
    %60 = arith.addf %57, %59 : vector<4x8x8xf32>
    %c0_25 = arith.constant 0 : index
    %c0_26 = arith.constant 0 : index
    %c0_27 = arith.constant 0 : index
    %61 = vector.load %arg8[%c0_25, %c0_26, %c0_27] : memref<4x32x8xbf16, #tpu.memory_space<vmem>>, vector<4x32x8xbf16>
    "tpu.trace_start"() <{level = 10 : i32, message = "hke,hed->hkd"}> : () -> ()
    %cst_28 = arith.constant dense<0.000000e+00> : vector<4x8x8xf32>
    %62 = tpu.matmul %55, %61, %cst_28 {dimension_numbers = #tpu.dot_dimension_numbers<[2], [1], [1], [2], [0, 0, 0, 1, 1, 2], [0], [0]>} : vector<4x8x32xbf16>, vector<4x32x8xbf16>, vector<4x8x8xf32> -> vector<4x8x8xf32>
    "tpu.trace_stop"() : () -> ()
    %c0_29 = arith.constant 0 : index
    %c0_30 = arith.constant 0 : index
    %c0_31 = arith.constant 0 : index
    %63 = vector.load %arg9[%c0_29, %c0_30, %c0_31] : memref<4x1x8xf32, #tpu.memory_space<vmem>>, vector<4x1x8xf32>
    %64 = vector.broadcast %63 : vector<4x1x8xf32> to vector<4x8x8xf32>
    %65 = arith.addf %62, %64 : vector<4x8x8xf32>
    %c0_32 = arith.constant 0 : index
    %c0_33 = arith.constant 0 : index
    %c0_34 = arith.constant 0 : index
    %66 = vector.load %arg10[%c0_32, %c0_33, %c0_34] : memref<4x32x8xbf16, #tpu.memory_space<vmem>>, vector<4x32x8xbf16>
    "tpu.trace_start"() <{level = 10 : i32, message = "hke,hed->hkd"}> : () -> ()
    %cst_35 = arith.constant dense<0.000000e+00> : vector<4x8x8xf32>
    %67 = tpu.matmul %55, %66, %cst_35 {dimension_numbers = #tpu.dot_dimension_numbers<[2], [1], [1], [2], [0, 0, 0, 1, 1, 2], [0], [0]>} : vector<4x8x32xbf16>, vector<4x32x8xbf16>, vector<4x8x8xf32> -> vector<4x8x8xf32>
    "tpu.trace_stop"() : () -> ()
    %c0_36 = arith.constant 0 : index
    %c0_37 = arith.constant 0 : index
    %c0_38 = arith.constant 0 : index
    %68 = vector.load %arg11[%c0_36, %c0_37, %c0_38] : memref<4x1x8xf32, #tpu.memory_space<vmem>>, vector<4x1x8xf32>
    %69 = vector.broadcast %68 : vector<4x1x8xf32> to vector<4x8x8xf32>
    %70 = arith.addf %67, %69 : vector<4x8x8xf32>
    %71 = arith.truncf %60 : vector<4x8x8xf32> to vector<4x8x8xbf16>
    %72 = arith.truncf %65 : vector<4x8x8xf32> to vector<4x8x8xbf16>
    "tpu.trace_start"() <{level = 10 : i32, message = "hqd,hkd->hqk"}> : () -> ()
    %cst_39 = arith.constant dense<0.000000e+00> : vector<4x8x8xf32>
    %73 = tpu.matmul %71, %72, %cst_39 {dimension_numbers = #tpu.dot_dimension_numbers<[2], [2], [1], [1], [0, 0, 0, 1, 1, 1], [0], [0]>} : vector<4x8x8xbf16>, vector<4x8x8xbf16>, vector<4x8x8xf32> -> vector<4x8x8xf32>
    "tpu.trace_stop"() : () -> ()
    %cst_40 = arith.constant 0.353553385 : f32
    %74 = vector.broadcast %cst_40 : f32 to vector<4x8x8xf32>
    %75 = arith.mulf %73, %74 : vector<4x8x8xf32>
    %cst_41 = arith.constant dense<0xFF800000> : vector<4x8xf32>
    %76 = vector.multi_reduction <maximumf>, %75, %cst_41 [2] : vector<4x8x8xf32> to vector<4x8xf32>
    %77 = vector.shape_cast %76 : vector<4x8xf32> to vector<4x8x1xf32>
    %78 = vector.broadcast %77 : vector<4x8x1xf32> to vector<4x8x8xf32>
    %79 = arith.subf %75, %78 : vector<4x8x8xf32>
    %80 = math.exp %79 : vector<4x8x8xf32>
    %cst_42 = arith.constant dense<0.000000e+00> : vector<4x8xf32>
    %81 = vector.multi_reduction <add>, %80, %cst_42 [2] : vector<4x8x8xf32> to vector<4x8xf32>
    %82 = vector.shape_cast %81 : vector<4x8xf32> to vector<4x8x1xf32>
    %83 = tpu.reciprocal %82 {approx = true} : vector<4x8x1xf32> -> vector<4x8x1xf32>
    %84 = vector.broadcast %83 : vector<4x8x1xf32> to vector<4x8x8xf32>
    %85 = arith.mulf %80, %84 : vector<4x8x8xf32>
    %86 = arith.truncf %85 : vector<4x8x8xf32> to vector<4x8x8xbf16>
    %87 = arith.truncf %70 : vector<4x8x8xf32> to vector<4x8x8xbf16>
    "tpu.trace_start"() <{level = 10 : i32, message = "hqk,hkd->hqd"}> : () -> ()
    %cst_43 = arith.constant dense<0.000000e+00> : vector<4x8x8xf32>
    %88 = tpu.matmul %86, %87, %cst_43 {dimension_numbers = #tpu.dot_dimension_numbers<[2], [1], [1], [2], [0, 0, 0, 1, 1, 2], [0], [0]>} : vector<4x8x8xbf16>, vector<4x8x8xbf16>, vector<4x8x8xf32> -> vector<4x8x8xf32>
    "tpu.trace_stop"() : () -> ()
    %89 = arith.truncf %88 : vector<4x8x8xf32> to vector<4x8x8xbf16>
    %c0_44 = arith.constant 0 : index
    %c0_45 = arith.constant 0 : index
    %c0_46 = arith.constant 0 : index
    %90 = vector.load %arg12[%c0_44, %c0_45, %c0_46] : memref<4x8x32xbf16, #tpu.memory_space<vmem>>, vector<4x8x32xbf16>
    "tpu.trace_start"() <{level = 10 : i32, message = "hqd,hde->hqe"}> : () -> ()
    %cst_47 = arith.constant dense<0.000000e+00> : vector<4x8x32xf32>
    %91 = tpu.matmul %89, %90, %cst_47 {dimension_numbers = #tpu.dot_dimension_numbers<[2], [1], [1], [2], [0, 0, 0, 1, 1, 2], [0], [0]>} : vector<4x8x8xbf16>, vector<4x8x32xbf16>, vector<4x8x32xf32> -> vector<4x8x32xf32>
    "tpu.trace_stop"() : () -> ()
    %cst_48 = arith.constant dense<0.000000e+00> : vector<8x32xf32>
    %92 = vector.multi_reduction <add>, %91, %cst_48 [0] : vector<4x8x32xf32> to vector<8x32xf32>
    %c0_49 = arith.constant 0 : index
    %c0_50 = arith.constant 0 : index
    %93 = vector.load %arg13[%c0_49, %c0_50] : memref<1x32xf32, #tpu.memory_space<vmem>>, vector<1x32xf32>
    %94 = vector.broadcast %93 : vector<1x32xf32> to vector<8x32xf32>
    %95 = arith.addf %92, %94 : vector<8x32xf32>
    %96 = arith.addf %1, %95 : vector<8x32xf32>
    %c0_51 = arith.constant 0 : index
    %c0_52 = arith.constant 0 : index
    %97 = vector.load %arg14[%c0_51, %c0_52] : memref<1x32xf32, #tpu.memory_space<vmem>>, vector<1x32xf32>
    %c0_53 = arith.constant 0 : index
    %c0_54 = arith.constant 0 : index
    %98 = vector.load %arg15[%c0_53, %c0_54] : memref<1x32xf32, #tpu.memory_space<vmem>>, vector<1x32xf32>
    %cst_55 = arith.constant dense<0.000000e+00> : vector<8xf32>
    %99 = vector.multi_reduction <add>, %96, %cst_55 [1] : vector<8x32xf32> to vector<8xf32>
    %100 = vector.shape_cast %99 : vector<8xf32> to vector<8x1xf32>
    %cst_56 = arith.constant 3.200000e+01 : f32
    %101 = vector.broadcast %cst_56 : f32 to vector<8x1xf32>
    %102 = arith.divf %100, %101 : vector<8x1xf32>
    %103 = arith.mulf %96, %96 : vector<8x32xf32>
    %cst_57 = arith.constant dense<0.000000e+00> : vector<8xf32>
    %104 = vector.multi_reduction <add>, %103, %cst_57 [1] : vector<8x32xf32> to vector<8xf32>
    %105 = vector.shape_cast %104 : vector<8xf32> to vector<8x1xf32>
    %cst_58 = arith.constant 3.200000e+01 : f32
    %106 = vector.broadcast %cst_58 : f32 to vector<8x1xf32>
    %107 = arith.divf %105, %106 : vector<8x1xf32>
    %108 = arith.mulf %102, %102 : vector<8x1xf32>
    %109 = arith.subf %107, %108 : vector<8x1xf32>
    %110 = vector.broadcast %102 : vector<8x1xf32> to vector<8x32xf32>
    %111 = arith.subf %96, %110 : vector<8x32xf32>
    %cst_59 = arith.constant 9.99999974E-6 : f32
    %112 = vector.broadcast %cst_59 : f32 to vector<8x1xf32>
    %113 = arith.addf %109, %112 : vector<8x1xf32>
    %114 = math.rsqrt %113 : vector<8x1xf32>
    %115 = vector.broadcast %114 : vector<8x1xf32> to vector<8x32xf32>
    %116 = arith.mulf %111, %115 : vector<8x32xf32>
    %117 = vector.broadcast %97 : vector<1x32xf32> to vector<8x32xf32>
    %118 = arith.mulf %116, %117 : vector<8x32xf32>
    %119 = vector.broadcast %98 : vector<1x32xf32> to vector<8x32xf32>
    %120 = arith.addf %118, %119 : vector<8x32xf32>
    %121 = arith.truncf %120 : vector<8x32xf32> to vector<8x32xbf16>
    %c0_60 = arith.constant 0 : index
    %c0_61 = arith.constant 0 : index
    %122 = vector.load %arg16[%c0_60, %c0_61] : memref<32x64xbf16, #tpu.memory_space<vmem>>, vector<32x64xbf16>
    %cst_62 = arith.constant dense<0.000000e+00> : vector<8x64xf32>
    %123 = tpu.matmul %121, %122, %cst_62 {dimension_numbers = #tpu.dot_dimension_numbers<[1], [0], [0], [1], [0, 0, 1, 1], [], []>} : vector<8x32xbf16>, vector<32x64xbf16>, vector<8x64xf32> -> vector<8x64xf32>
    %c0_63 = arith.constant 0 : index
    %c0_64 = arith.constant 0 : index
    %124 = vector.load %arg17[%c0_63, %c0_64] : memref<1x64xf32, #tpu.memory_space<vmem>>, vector<1x64xf32>
    %125 = vector.broadcast %124 : vector<1x64xf32> to vector<8x64xf32>
    %126 = arith.addf %123, %125 : vector<8x64xf32>
    %cst_65 = arith.constant 5.000000e-01 : f32
    %127 = vector.broadcast %cst_65 : f32 to vector<8x64xf32>
    %128 = arith.mulf %127, %126 : vector<8x64xf32>
    %cst_66 = arith.constant 0.707106769 : f32
    %129 = vector.broadcast %cst_66 : f32 to vector<8x64xf32>
    %130 = arith.mulf %126, %129 : vector<8x64xf32>
    %cst_67 = arith.constant 0.000000e+00 : f32
    %131 = vector.broadcast %cst_67 : f32 to vector<8x64xf32>
    %132 = arith.cmpf oge, %130, %131 : vector<8x64xf32>
    %cst_68 = arith.constant 1.000000e+00 : f32
    %cst_69 = arith.constant -1.000000e+00 : f32
    %133 = vector.broadcast %cst_68 : f32 to vector<8x64xf32>
    %134 = vector.broadcast %cst_69 : f32 to vector<8x64xf32>
    %135 = arith.select %132, %133, %134 : vector<8x64xi1>, vector<8x64xf32>
    %136 = math.absf %130 : vector<8x64xf32>
    %cst_70 = arith.constant 0.327591091 : f32
    %137 = vector.broadcast %cst_70 : f32 to vector<8x64xf32>
    %138 = arith.mulf %137, %136 : vector<8x64xf32>
    %cst_71 = arith.constant 1.000000e+00 : f32
    %139 = vector.broadcast %cst_71 : f32 to vector<8x64xf32>
    %140 = arith.addf %139, %138 : vector<8x64xf32>
    %cst_72 = arith.constant 1.000000e+00 : f32
    %141 = vector.broadcast %cst_72 : f32 to vector<8x64xf32>
    %142 = arith.divf %141, %140 : vector<8x64xf32>
    %cst_73 = arith.constant 1.06140542 : f32
    %143 = vector.broadcast %cst_73 : f32 to vector<8x64xf32>
    %144 = arith.mulf %143, %142 : vector<8x64xf32>
    %cst_74 = arith.constant -1.45315206 : f32
    %145 = vector.broadcast %cst_74 : f32 to vector<8x64xf32>
    %146 = arith.addf %144, %145 : vector<8x64xf32>
    %147 = arith.mulf %146, %142 : vector<8x64xf32>
    %cst_75 = arith.constant 1.42141378 : f32
    %148 = vector.broadcast %cst_75 : f32 to vector<8x64xf32>
    %149 = arith.addf %147, %148 : vector<8x64xf32>
    %150 = arith.mulf %149, %142 : vector<8x64xf32>
    %cst_76 = arith.constant -0.284496725 : f32
    %151 = vector.broadcast %cst_76 : f32 to vector<8x64xf32>
    %152 = arith.addf %150, %151 : vector<8x64xf32>
    %153 = arith.mulf %152, %142 : vector<8x64xf32>
    %cst_77 = arith.constant 0.254829586 : f32
    %154 = vector.broadcast %cst_77 : f32 to vector<8x64xf32>
    %155 = arith.addf %153, %154 : vector<8x64xf32>
    %156 = arith.mulf %155, %142 : vector<8x64xf32>
    %cst_78 = arith.constant 0.000000e+00 : f32
    %157 = vector.broadcast %cst_78 : f32 to vector<8x64xf32>
    %158 = arith.subf %157, %136 : vector<8x64xf32>
    %159 = arith.mulf %158, %136 : vector<8x64xf32>
    %160 = math.exp %159 : vector<8x64xf32>
    %161 = arith.mulf %156, %160 : vector<8x64xf32>
    %cst_79 = arith.constant 1.000000e+00 : f32
    %162 = vector.broadcast %cst_79 : f32 to vector<8x64xf32>
    %163 = arith.subf %162, %161 : vector<8x64xf32>
    %164 = arith.mulf %135, %163 : vector<8x64xf32>
    %cst_80 = arith.constant 1.000000e+00 : f32
    %165 = vector.broadcast %cst_80 : f32 to vector<8x64xf32>
    %166 = arith.addf %165, %164 : vector<8x64xf32>
    %167 = arith.mulf %128, %166 : vector<8x64xf32>
    %168 = arith.truncf %167 : vector<8x64xf32> to vector<8x64xbf16>
    %c0_81 = arith.constant 0 : index
    %c0_82 = arith.constant 0 : index
    %169 = vector.load %arg18[%c0_81, %c0_82] : memref<64x32xbf16, #tpu.memory_space<vmem>>, vector<64x32xbf16>
    %cst_83 = arith.constant dense<0.000000e+00> : vector<8x32xf32>
    %170 = tpu.matmul %168, %169, %cst_83 {dimension_numbers = #tpu.dot_dimension_numbers<[1], [0], [0], [1], [0, 0, 1, 1], [], []>} : vector<8x64xbf16>, vector<64x32xbf16>, vector<8x32xf32> -> vector<8x32xf32>
    %c0_84 = arith.constant 0 : index
    %c0_85 = arith.constant 0 : index
    %171 = vector.load %arg19[%c0_84, %c0_85] : memref<1x32xf32, #tpu.memory_space<vmem>>, vector<1x32xf32>
    %172 = vector.broadcast %171 : vector<1x32xf32> to vector<8x32xf32>
    %173 = arith.addf %170, %172 : vector<8x32xf32>
    %174 = arith.addf %96, %173 : vector<8x32xf32>
    %c0_86 = arith.constant 0 : index
    %c0_87 = arith.constant 0 : index
    %c0_88 = arith.constant 0 : index
    %175 = vector.load %arg20[%c0_86, %c0_87, %c0_88] : memref<1x8x32xf32, #tpu.memory_space<vmem>>, vector<1x8x32xf32>
    %176 = vector.shape_cast %175 : vector<1x8x32xf32> to vector<8x32xf32>
    %177 = vector.shape_cast %174 : vector<8x32xf32> to vector<1x8x32xf32>
    tpu.vector_store %arg20[%c0_86, %c0_87, %c0_88], %177 {strides = array<i32>} : memref<1x8x32xf32, #tpu.memory_space<vmem>>, vector<1x8x32xf32>,
    return
  }
  func.func @transform_0(%arg0: i32, %arg1: i32) -> (i32, i32, i32) {
    %c0_i32 = arith.constant 0 : i32
    %c0_i32_0 = arith.constant 0 : i32
    return %arg0, %arg1, %c0_i32 : i32, i32, i32
  }
  func.func @transform_1(%arg0: i32, %arg1: i32) -> (i32, i32, i32) {
    %c0_i32 = arith.constant 0 : i32
    %c0_i32_0 = arith.constant 0 : i32
    %c0_i32_1 = arith.constant 0 : i32
    return %arg0, %c0_i32, %c0_i32_0 : i32, i32, i32
  }
  func.func @transform_2(%arg0: i32, %arg1: i32) -> (i32, i32) {
    %c0_i32 = arith.constant 0 : i32
    %c0_i32_0 = arith.constant 0 : i32
    %c0_i32_1 = arith.constant 0 : i32
    return %c0_i32, %c0_i32_0 : i32, i32
  }
  func.func @transform_3(%arg0: i32, %arg1: i32) -> (i32, i32) {
    %c0_i32 = arith.constant 0 : i32
    %c0_i32_0 = arith.constant 0 : i32
    %c0_i32_1 = arith.constant 0 : i32
    return %c0_i32, %c0_i32_0 : i32, i32
  }
  func.func @transform_4(%arg0: i32, %arg1: i32) -> (i32, i32, i32) {
    %c0_i32 = arith.constant 0 : i32
    %c0_i32_0 = arith.constant 0 : i32
    %c0_i32_1 = arith.constant 0 : i32
    %c0_i32_2 = arith.constant 0 : i32
    return %c0_i32, %c0_i32_0, %c0_i32_1 : i32, i32, i32
  }
  func.func @transform_5(%arg0: i32, %arg1: i32) -> (i32, i32, i32) {
    %c0_i32 = arith.constant 0 : i32
    %c0_i32_0 = arith.constant 0 : i32
    %c0_i32_1 = arith.constant 0 : i32
    %c0_i32_2 = arith.constant 0 : i32
    return %c0_i32, %c0_i32_0, %c0_i32_1 : i32, i32, i32
  }
  func.func @transform_6(%arg0: i32, %arg1: i32) -> (i32, i32, i32) {
    %c0_i32 = arith.constant 0 : i32
    %c0_i32_0 = arith.constant 0 : i32
    %c0_i32_1 = arith.constant 0 : i32
    %c0_i32_2 = arith.constant 0 : i32
    return %c0_i32, %c0_i32_0, %c0_i32_1 : i32, i32, i32
  }
  func.func @transform_7(%arg0: i32, %arg1: i32) -> (i32, i32, i32) {
    %c0_i32 = arith.constant 0 : i32
    %c0_i32_0 = arith.constant 0 : i32
    %c0_i32_1 = arith.constant 0 : i32
    %c0_i32_2 = arith.constant 0 : i32
    return %c0_i32, %c0_i32_0, %c0_i32_1 : i32, i32, i32
  }
  func.func @transform_8(%arg0: i32, %arg1: i32) -> (i32, i32, i32) {
    %c0_i32 = arith.constant 0 : i32
    %c0_i32_0 = arith.constant 0 : i32
    %c0_i32_1 = arith.constant 0 : i32
    %c0_i32_2 = arith.constant 0 : i32
    return %c0_i32, %c0_i32_0, %c0_i32_1 : i32, i32, i32
  }
  func.func @transform_9(%arg0: i32, %arg1: i32) -> (i32, i32, i32) {
    %c0_i32 = arith.constant 0 : i32
    %c0_i32_0 = arith.constant 0 : i32
    %c0_i32_1 = arith.constant 0 : i32
    %c0_i32_2 = arith.constant 0 : i32
    return %c0_i32, %c0_i32_0, %c0_i32_1 : i32, i32, i32
  }
  func.func @transform_10(%arg0: i32, %arg1: i32) -> (i32, i32, i32) {
    %c0_i32 = arith.constant 0 : i32
    %c0_i32_0 = arith.constant 0 : i32
    %c0_i32_1 = arith.constant 0 : i32
    %c0_i32_2 = arith.constant 0 : i32
    return %c0_i32, %c0_i32_0, %c0_i32_1 : i32, i32, i32
  }
  func.func @transform_11(%arg0: i32, %arg1: i32) -> (i32, i32) {
    %c0_i32 = arith.constant 0 : i32
    %c0_i32_0 = arith.constant 0 : i32
    %c0_i32_1 = arith.constant 0 : i32
    return %c0_i32, %c0_i32_0 : i32, i32
  }
  func.func @transform_12(%arg0: i32, %arg1: i32) -> (i32, i32) {
    %c0_i32 = arith.constant 0 : i32
    %c0_i32_0 = arith.constant 0 : i32
    %c0_i32_1 = arith.constant 0 : i32
    return %c0_i32, %c0_i32_0 : i32, i32
  }
  func.func @transform_13(%arg0: i32, %arg1: i32) -> (i32, i32) {
    %c0_i32 = arith.constant 0 : i32
    %c0_i32_0 = arith.constant 0 : i32
    %c0_i32_1 = arith.constant 0 : i32
    return %c0_i32, %c0_i32_0 : i32, i32
  }
  func.func @transform_14(%arg0: i32, %arg1: i32) -> (i32, i32) {
    %c0_i32 = arith.constant 0 : i32
    %c0_i32_0 = arith.constant 0 : i32
    %c0_i32_1 = arith.constant 0 : i32
    return %c0_i32, %c0_i32_0 : i32, i32
  }
  func.func @transform_15(%arg0: i32, %arg1: i32) -> (i32, i32) {
    %c0_i32 = arith.constant 0 : i32
    %c0_i32_0 = arith.constant 0 : i32
    %c0_i32_1 = arith.constant 0 : i32
    return %c0_i32, %c0_i32_0 : i32, i32
  }
  func.func @transform_16(%arg0: i32, %arg1: i32) -> (i32, i32) {
    %c0_i32 = arith.constant 0 : i32
    %c0_i32_0 = arith.constant 0 : i32
    %c0_i32_1 = arith.constant 0 : i32
    return %c0_i32, %c0_i32_0 : i32, i32
  }
  func.func @transform_17(%arg0: i32, %arg1: i32) -> (i32, i32) {
    %c0_i32 = arith.constant 0 : i32
    %c0_i32_0 = arith.constant 0 : i32
    %c0_i32_1 = arith.constant 0 : i32
    return %c0_i32, %c0_i32_0 : i32, i32
  }
  func.func @transform_18(%arg0: i32, %arg1: i32) -> (i32, i32, i32) {
    %c0_i32 = arith.constant 0 : i32
    %c0_i32_0 = arith.constant 0 : i32
    return %arg0, %arg1, %c0_i32 : i32, i32, i32
  }
}

</mosaic_0001>

<llo_original>
// kernel: tpu_custom_call.1
$region0: #{tpu_custom_call.1}
  #allocation0 [shape = 'u32[]', space=smem, size = 0x4, offset = 0x4, fixed_abs, tag = 'smem constant byte address 0x4 - core index']
  #allocation1 [shape = 'u32[144,128]{1,0:T(1,128)}', space=vmem, size = 0x12000, scoped, tag = 'internal scratch']
  %s0 = inlined_call_operand.hbm [shape: f32[2,8,32], index: 0, kind: input, shape index: {}]
  %s1 = inlined_call_operand.hbm [shape: f32[2,8,32], index: 1, kind: input, shape index: {}]
  %s2 = inlined_call_operand.hbm [shape: f32[1,32], index: 2, kind: input, shape index: {}]
  %s3 = inlined_call_operand.hbm [shape: f32[1,32], index: 3, kind: input, shape index: {}]
  %s4 = inlined_call_operand.hbm [shape: bf16[4,32,8], index: 4, kind: input, shape index: {}]
  %s5 = inlined_call_operand.hbm [shape: f32[4,1,8], index: 5, kind: input, shape index: {}]
  %s6 = inlined_call_operand.hbm [shape: bf16[4,32,8], index: 6, kind: input, shape index: {}]
  %s7 = inlined_call_operand.hbm [shape: f32[4,1,8], index: 7, kind: input, shape index: {}]
  %s8 = inlined_call_operand.hbm [shape: bf16[4,32,8], index: 8, kind: input, shape index: {}]
  %s9 = inlined_call_operand.hbm [shape: f32[4,1,8], index: 9, kind: input, shape index: {}]
  %s10 = inlined_call_operand.hbm [shape: bf16[4,8,32], index: 10, kind: input, shape index: {}]
  %s11 = inlined_call_operand.hbm [shape: f32[1,32], index: 11, kind: input, shape index: {}]
  %s12 = inlined_call_operand.hbm [shape: f32[1,32], index: 12, kind: input, shape index: {}]
  %s13 = inlined_call_operand.hbm [shape: f32[1,32], index: 13, kind: input, shape index: {}]
  %s14 = inlined_call_operand.hbm [shape: bf16[32,64], index: 14, kind: input, shape index: {}]
  %s15 = inlined_call_operand.hbm [shape: f32[1,64], index: 15, kind: input, shape index: {}]
  %s16 = inlined_call_operand.hbm [shape: bf16[64,32], index: 16, kind: input, shape index: {}]
  %s17 = inlined_call_operand.hbm [shape: f32[1,32], index: 17, kind: input, shape index: {}]
  %s18 = inlined_call_operand.hbm [shape: f32[2,8,32], index: 18, kind: output, shape index: {}]
  %s19 = sld [smem:[#allocation0]]
  $region177: #{tpu_custom_call.1} parent=0
    _
  %s21 = ssub.s32 1, %s19
  %s22 = scalar_select 0, %s21, %s19
  $region1: #{tpu_custom_call.1} parent=0
    #allocation2 [shape = 'u8[8192]{0}', space=vmem, size = 0x2000, scoped, tag = 'input window, operand 0']
    #allocation3 [shape = 's32[2]{0}', space=sflag, size = 0x8, scoped, tag = 'scoped memory for tpu_custom_call.1']
    #allocation4 [shape = 's32[2]{0}', space=sflag, size = 0x8, scoped, tag = 'scoped memory for tpu_custom_call.1']
    #allocation5 [shape = 'u8[8192]{0}', space=vmem, size = 0x2000, scoped, tag = 'input window, operand 1']
    #allocation6 [shape = 's32[2]{0}', space=sflag, size = 0x8, scoped, tag = 'scoped memory for tpu_custom_call.1']
    #allocation7 [shape = 'u8[512]{0}', space=vmem, size = 0x400, scoped, tag = 'input window, operand 2, single buffered']
    #allocation8 [shape = 'u8[512]{0}', space=vmem, size = 0x400, scoped, tag = 'input window, operand 3, single buffered']
    #allocation9 [shape = 's32[1]{0}', space=sflag, size = 0x4, scoped, tag = 'scoped memory for tpu_custom_call.1']
    #allocation10 [shape = 'u8[32768]{0}', space=vmem, size = 0x8000, scoped, tag = 'input window, operand 4, single buffered']
    #allocation11 [shape = 'u8[2048]{0}', space=vmem, size = 0x800, scoped, tag = 'input window, operand 5, single buffered']
    #allocation12 [shape = 's32[1]{0}', space=sflag, size = 0x4, scoped, tag = 'scoped memory for tpu_custom_call.1']
    #allocation13 [shape = 'u8[32768]{0}', space=vmem, size = 0x8000, scoped, tag = 'input window, operand 6, single buffered']
    #allocation14 [shape = 'u8[2048]{0}', space=vmem, size = 0x800, scoped, tag = 'input window, operand 7, single buffered']
    #allocation15 [shape = 's32[1]{0}', space=sflag, size = 0x4, scoped, tag = 'scoped memory for tpu_custom_call.1']
    #allocation16 [shape = 'u8[32768]{0}', space=vmem, size = 0x8000, scoped, tag = 'input window, operand 8, single buffered']
    #allocation17 [shape = 'u8[2048]{0}', space=vmem, size = 0x800, scoped, tag = 'input window, operand 9, single buffered']
    #allocation18 [shape = 's32[1]{0}', space=sflag, size = 0x4, scoped, tag = 'scoped memory for tpu_custom_call.1']
    #allocation19 [shape = 'u8[8192]{0}', space=vmem, size = 0x2000, scoped, tag = 'input window, operand 10, single buffered']
    #allocation20 [shape = 'u8[512]{0}', space=vmem, size = 0x400, scoped, tag = 'input window, operand 11, single buffered']
    #allocation21 [shape = 's32[1]{0}', space=sflag, size = 0x4, scoped, tag = 'scoped memory for tpu_custom_call.1']
    #allocation22 [shape = 'u8[512]{0}', space=vmem, size = 0x400, scoped, tag = 'input window, operand 12, single buffered']
    #allocation23 [shape = 'u8[512]{0}', space=vmem, size = 0x400, scoped, tag = 'input window, operand 13, single buffered']
    #allocation24 [shape = 's32[1]{0}', space=sflag, size = 0x4, scoped, tag = 'scoped memory for tpu_custom_call.1']
    #allocation25 [shape = 'u8[8192]{0}', space=vmem, size = 0x2000, scoped, tag = 'input window, operand 14, single buffered']
    #allocation26 [shape = 'u8[512]{0}', space=vmem, size = 0x400, scoped, tag = 'input window, operand 15, single buffered']
    #allocation27 [shape = 's32[1]{0}', space=sflag, size = 0x4, scoped, tag = 'scoped memory for tpu_custom_call.1']
    #allocation28 [shape = 'u8[16384]{0}', space=vmem, size = 0x4000, scoped, tag = 'input window, operand 16, single buffered']
    #allocation29 [shape = 'u8[512]{0}', space=vmem, size = 0x400, scoped, tag = 'input window, operand 17, single buffered']
    #allocation30 [shape = 's32[1]{0}', space=sflag, size = 0x4, scoped, tag = 'scoped memory for tpu_custom_call.1']
    #allocation31 [shape = 'u8[8192]{0}', space=vmem, size = 0x2000, scoped, tag = 'output window, operand 0']
    %23 = vsyncpa [#allocation3], 0
    %s24 = scalar_lea.sflag [#allocation3], 1
    %25 = vsyncpa %s24, 0
    %26 = vsyncpa [#allocation6], 0
    %s27 = scalar_lea.sflag [#allocation6], 1
    %28 = vsyncpa %s27, 0
    %29 = vsyncpa [#allocation9], 0
    %30 = vsyncpa [#allocation12], 0
    %31 = vsyncpa [#allocation15], 0
    %32 = vsyncpa [#allocation18], 0
    %33 = vsyncpa [#allocation21], 0
    %34 = vsyncpa [#allocation24], 0
    %35 = vsyncpa [#allocation27], 0
    %36 = vsyncpa [#allocation30], 0
    %37 = vsyncpa [#allocation4], 0
    %s38 = scalar_lea.sflag [#allocation4], 1
    %39 = vsyncpa %s38, 0
    loop: start=0, step=1, limit=4
    $region2: #{tpu_custom_call.1} parent=1 // loop_pre_header
      _
    $region3: #{tpu_custom_call.1} parent=1 // loop_header
      %s41 = sphi 0, %s45
      %p42 = scmp.ge.s32.totalorder %s41, 4
      %s48 = sphi 0, %s60
      %s49 = sphi 0, %s56
      %s50 = sphi 0, %s48
      %s51 = sphi 0, %s49
      %s52 = sphi 0, %s50
      %s53 = sphi 0, %s51
      %s65 = sphi 0, %s67
      %s68 = sphi 0, %s65
      %s69 = sphi 0, %s68
      %s85 = sphi 0, %s69
      %s91 = sphi 0, %s93
      %s94 = sphi 0, %s91
      %s95 = sphi 0, %s94
      %s111 = sphi 0, %s95
      %s115 = sphi 0, %s115
      %s117 = sphi 0, %s115
      %s118 = sphi 0, %s117
      %s132 = sphi 0, %s118
      %s136 = sphi 0, %s136
      %s138 = sphi 0, %s136
      %s139 = sphi 0, %s138
      %s153 = sphi 0, %s139
      %s157 = sphi 0, %s157
      %s159 = sphi 0, %s157
      %s160 = sphi 0, %s159
      %s174 = sphi 0, %s160
      %s178 = sphi 0, %s178
      %s180 = sphi 0, %s178
      %s181 = sphi 0, %s180
      %s195 = sphi 0, %s181
      %s199 = sphi 0, %s199
      %s201 = sphi 0, %s199
      %s202 = sphi 0, %s201
      %s216 = sphi 0, %s202
      %s220 = sphi 0, %s220
      %s222 = sphi 0, %s220
      %s223 = sphi 0, %s222
      %s237 = sphi 0, %s223
      %s241 = sphi 0, %s241
      %s243 = sphi 0, %s241
      %s244 = sphi 0, %s243
      %s258 = sphi 0, %s244
      %s262 = sphi 0, %s262
      %s264 = sphi 0, %s262
      %s265 = sphi 0, %s264
      %s279 = sphi 0, %s265
      %s283 = sphi 0, %s283
      %s285 = sphi 0, %s283
      %s286 = sphi 0, %s285
      %s300 = sphi 0, %s286
      %s304 = sphi 0, %s304
      %s306 = sphi 0, %s304
      %s307 = sphi 0, %s306
      %s321 = sphi 0, %s307
      %s325 = sphi 0, %s325
      %s327 = sphi 0, %s325
      %s328 = sphi 0, %s327
      %s342 = sphi 0, %s328
      %s346 = sphi 0, %s346
      %s348 = sphi 0, %s346
      %s349 = sphi 0, %s348
      %s363 = sphi 0, %s349
      %s367 = sphi 0, %s367
      %s369 = sphi 0, %s367
      %s370 = sphi 0, %s369
      %s384 = sphi 0, %s370
      %s388 = sphi 0, %s388
      %s390 = sphi 0, %s388
      %s391 = sphi 0, %s390
      %s405 = sphi 0, %s391
      %s409 = sphi 0, %s409
      %s411 = sphi 0, %s409
      %s412 = sphi 0, %s411
      %s426 = sphi 0, %s412
      %s430 = sphi 0, %s430
      %s432 = sphi 0, %s430
      %s433 = sphi 0, %s432
      %s447 = sphi 0, %s433
      %s455 = sphi 0, %s457
      %s458 = sphi 0, %s455
      %s459 = sphi 0, %s458
      %s475 = sphi 0, %s459
    $region4: #{tpu_custom_call.1} parent=1 // loop_header_branch
      %44 = sbr.rel (%p42) target = $region8
    $region5: #{tpu_custom_call.1} parent=1 // loop_body
      %s46 = ssub.s32 %s41, 1
      %s47 = ssub.s32 %s41, 2
      %s54 = sadd.s32 1, %s49
      %p55 = scmp.ge.s32.totalorder %s54, 1
      %s56 = scalar_select %p55, 0, %s54
      %s57 = sadd.s32 1, %s48
      %s58 = scalar_select %p55, %s57, %s48
      %p59 = scmp.ge.s32.totalorder %s58, 2
      %s60 = scalar_select %p59, 0, %s58
      %s61 = ssub.s32 %s48, %s60
      %s62 = ssub.s32 %s49, %s56
      %s63 = sor.u32 %s61, %s62
      %p64 = scmp.eq.s32.totalorder %s63, 0
      %s66 = sadd.s32 %s65, 1
      %s67 = scalar_select %p64, %s65, %s66
      %p70 = pneg %p64
      %p71 = scmp.eq.s32.totalorder %s41, 1
      %p72 = por %p70, %p71
      %p73 = scmp.ne.s32.totalorder %s65, %s68
      %p74 = scmp.eq.s32.totalorder %s41, 0
      %p75 = por %p73, %p74
      %p76 = scmp.ne.s32.totalorder %s65, %s68
      %p77 = scmp.eq.s32.totalorder %s46, 1
      %p78 = por %p76, %p77
      %p79 = scmp.ne.s32.totalorder %s68, %s69
      %p80 = scmp.eq.s32.totalorder %s46, 0
      %p81 = por %p79, %p80
      %p82 = scmp.ne.s32.totalorder %s68, %s69
      %p83 = scmp.eq.s32.totalorder %s47, 1
      %p84 = por %p82, %p83
      %p86 = scmp.ne.s32.totalorder %s69, %s85
      %p87 = scmp.eq.s32.totalorder %s47, 0
      %p88 = por %p86, %p87
      %s89 = ssub.s32 %s48, %s60
      %p90 = scmp.eq.s32.totalorder %s89, 0
      %s92 = sadd.s32 %s91, 1
      %s93 = scalar_select %p90, %s91, %s92
      %p96 = pneg %p90
      %p97 = scmp.eq.s32.totalorder %s41, 1
      %p98 = por %p96, %p97
      %p99 = scmp.ne.s32.totalorder %s91, %s94
      %p100 = scmp.eq.s32.totalorder %s41, 0
      %p101 = por %p99, %p100
      %p102 = scmp.ne.s32.totalorder %s91, %s94
      %p103 = scmp.eq.s32.totalorder %s46, 1
      %p104 = por %p102, %p103
      %p105 = scmp.ne.s32.totalorder %s94, %s95
      %p106 = scmp.eq.s32.totalorder %s46, 0
      %p107 = por %p105, %p106
      %p108 = scmp.ne.s32.totalorder %s94, %s95
      %p109 = scmp.eq.s32.totalorder %s47, 1
      %p110 = por %p108, %p109
      %p112 = scmp.ne.s32.totalorder %s95, %s111
      %p113 = scmp.eq.s32.totalorder %s47, 0
      %p114 = por %p112, %p113
      %s116 = sadd.s32 %s115, 1
      %p119 = scmp.eq.s32.totalorder %s41, 1
      %p120 = scmp.ne.s32.totalorder %s115, %s117
      %p121 = scmp.eq.s32.totalorder %s41, 0
      %p122 = por %p120, %p121
      %p123 = scmp.ne.s32.totalorder %s115, %s117
      %p124 = scmp.eq.s32.totalorder %s46, 1
      %p125 = por %p123, %p124
      %p126 = scmp.ne.s32.totalorder %s117, %s118
      %p127 = scmp.eq.s32.totalorder %s46, 0
      %p128 = por %p126, %p127
      %p129 = scmp.ne.s32.totalorder %s117, %s118
      %p130 = scmp.eq.s32.totalorder %s47, 1
      %p131 = por %p129, %p130
      %p133 = scmp.ne.s32.totalorder %s118, %s132
      %p134 = scmp.eq.s32.totalorder %s47, 0
      %p135 = por %p133, %p134
      %s137 = sadd.s32 %s136, 1
      %p140 = scmp.eq.s32.totalorder %s41, 1
      %p141 = scmp.ne.s32.totalorder %s136, %s138
      %p142 = scmp.eq.s32.totalorder %s41, 0
      %p143 = por %p141, %p142
      %p144 = scmp.ne.s32.totalorder %s136, %s138
      %p145 = scmp.eq.s32.totalorder %s46, 1
      %p146 = por %p144, %p145
      %p147 = scmp.ne.s32.totalorder %s138, %s139
      %p148 = scmp.eq.s32.totalorder %s46, 0
      %p149 = por %p147, %p148
      %p150 = scmp.ne.s32.totalorder %s138, %s139
      %p151 = scmp.eq.s32.totalorder %s47, 1
      %p152 = por %p150, %p151
      %p154 = scmp.ne.s32.totalorder %s139, %s153
      %p155 = scmp.eq.s32.totalorder %s47, 0
      %p156 = por %p154, %p155
      %s158 = sadd.s32 %s157, 1
      %p161 = scmp.eq.s32.totalorder %s41, 1
      %p162 = scmp.ne.s32.totalorder %s157, %s159
      %p163 = scmp.eq.s32.totalorder %s41, 0
      %p164 = por %p162, %p163
      %p165 = scmp.ne.s32.totalorder %s157, %s159
      %p166 = scmp.eq.s32.totalorder %s46, 1
      %p167 = por %p165, %p166
      %p168 = scmp.ne.s32.totalorder %s159, %s160
      %p169 = scmp.eq.s32.totalorder %s46, 0
      %p170 = por %p168, %p169
      %p171 = scmp.ne.s32.totalorder %s159, %s160
      %p172 = scmp.eq.s32.totalorder %s47, 1
      %p173 = por %p171, %p172
      %p175 = scmp.ne.s32.totalorder %s160, %s174
      %p176 = scmp.eq.s32.totalorder %s47, 0
      %p177 = por %p175, %p176
      %s179 = sadd.s32 %s178, 1
      %p182 = scmp.eq.s32.totalorder %s41, 1
      %p183 = scmp.ne.s32.totalorder %s178, %s180
      %p184 = scmp.eq.s32.totalorder %s41, 0
      %p185 = por %p183, %p184
      %p186 = scmp.ne.s32.totalorder %s178, %s180
      %p187 = scmp.eq.s32.totalorder %s46, 1
      %p188 = por %p186, %p187
      %p189 = scmp.ne.s32.totalorder %s180, %s181
      %p190 = scmp.eq.s32.totalorder %s46, 0
      %p191 = por %p189, %p190
      %p192 = scmp.ne.s32.totalorder %s180, %s181
      %p193 = scmp.eq.s32.totalorder %s47, 1
      %p194 = por %p192, %p193
      %p196 = scmp.ne.s32.totalorder %s181, %s195
      %p197 = scmp.eq.s32.totalorder %s47, 0
      %p198 = por %p196, %p197
      %s200 = sadd.s32 %s199, 1
      %p203 = scmp.eq.s32.totalorder %s41, 1
      %p204 = scmp.ne.s32.totalorder %s199, %s201
      %p205 = scmp.eq.s32.totalorder %s41, 0
      %p206 = por %p204, %p205
      %p207 = scmp.ne.s32.totalorder %s199, %s201
      %p208 = scmp.eq.s32.totalorder %s46, 1
      %p209 = por %p207, %p208
      %p210 = scmp.ne.s32.totalorder %s201, %s202
      %p211 = scmp.eq.s32.totalorder %s46, 0
      %p212 = por %p210, %p211
      %p213 = scmp.ne.s32.totalorder %s201, %s202
      %p214 = scmp.eq.s32.totalorder %s47, 1
      %p215 = por %p213, %p214
      %p217 = scmp.ne.s32.totalorder %s202, %s216
      %p218 = scmp.eq.s32.totalorder %s47, 0
      %p219 = por %p217, %p218
      %s221 = sadd.s32 %s220, 1
      %p224 = scmp.eq.s32.totalorder %s41, 1
      %p225 = scmp.ne.s32.totalorder %s220, %s222
      %p226 = scmp.eq.s32.totalorder %s41, 0
      %p227 = por %p225, %p226
      %p228 = scmp.ne.s32.totalorder %s220, %s222
      %p229 = scmp.eq.s32.totalorder %s46, 1
      %p230 = por %p228, %p229
      %p231 = scmp.ne.s32.totalorder %s222, %s223
      %p232 = scmp.eq.s32.totalorder %s46, 0
      %p233 = por %p231, %p232
      %p234 = scmp.ne.s32.totalorder %s222, %s223
      %p235 = scmp.eq.s32.totalorder %s47, 1
      %p236 = por %p234, %p235
      %p238 = scmp.ne.s32.totalorder %s223, %s237
      %p239 = scmp.eq.s32.totalorder %s47, 0
      %p240 = por %p238, %p239
      %s242 = sadd.s32 %s241, 1
      %p245 = scmp.eq.s32.totalorder %s41, 1
      %p246 = scmp.ne.s32.totalorder %s241, %s243
      %p247 = scmp.eq.s32.totalorder %s41, 0
      %p248 = por %p246, %p247
      %p249 = scmp.ne.s32.totalorder %s241, %s243
      %p250 = scmp.eq.s32.totalorder %s46, 1
      %p251 = por %p249, %p250
      %p252 = scmp.ne.s32.totalorder %s243, %s244
      %p253 = scmp.eq.s32.totalorder %s46, 0
      %p254 = por %p252, %p253
      %p255 = scmp.ne.s32.totalorder %s243, %s244
      %p256 = scmp.eq.s32.totalorder %s47, 1
      %p257 = por %p255, %p256
      %p259 = scmp.ne.s32.totalorder %s244, %s258
      %p260 = scmp.eq.s32.totalorder %s47, 0
      %p261 = por %p259, %p260
      %s263 = sadd.s32 %s262, 1
      %p266 = scmp.eq.s32.totalorder %s41, 1
      %p267 = scmp.ne.s32.totalorder %s262, %s264
      %p268 = scmp.eq.s32.totalorder %s41, 0
      %p269 = por %p267, %p268
      %p270 = scmp.ne.s32.totalorder %s262, %s264
      %p271 = scmp.eq.s32.totalorder %s46, 1
      %p272 = por %p270, %p271
      %p273 = scmp.ne.s32.totalorder %s264, %s265
      %p274 = scmp.eq.s32.totalorder %s46, 0
      %p275 = por %p273, %p274
      %p276 = scmp.ne.s32.totalorder %s264, %s265
      %p277 = scmp.eq.s32.totalorder %s47, 1
      %p278 = por %p276, %p277
      %p280 = scmp.ne.s32.totalorder %s265, %s279
      %p281 = scmp.eq.s32.totalorder %s47, 0
      %p282 = por %p280, %p281
      %s284 = sadd.s32 %s283, 1
      %p287 = scmp.eq.s32.totalorder %s41, 1
      %p288 = scmp.ne.s32.totalorder %s283, %s285
      %p289 = scmp.eq.s32.totalorder %s41, 0
      %p290 = por %p288, %p289
      %p291 = scmp.ne.s32.totalorder %s283, %s285
      %p292 = scmp.eq.s32.totalorder %s46, 1
      %p293 = por %p291, %p292
      %p294 = scmp.ne.s32.totalorder %s285, %s286
      %p295 = scmp.eq.s32.totalorder %s46, 0
      %p296 = por %p294, %p295
      %p297 = scmp.ne.s32.totalorder %s285, %s286
      %p298 = scmp.eq.s32.totalorder %s47, 1
      %p299 = por %p297, %p298
      %p301 = scmp.ne.s32.totalorder %s286, %s300
      %p302 = scmp.eq.s32.totalorder %s47, 0
      %p303 = por %p301, %p302
      %s305 = sadd.s32 %s304, 1
      %p308 = scmp.eq.s32.totalorder %s41, 1
      %p309 = scmp.ne.s32.totalorder %s304, %s306
      %p310 = scmp.eq.s32.totalorder %s41, 0
      %p311 = por %p309, %p310
      %p312 = scmp.ne.s32.totalorder %s304, %s306
      %p313 = scmp.eq.s32.totalorder %s46, 1
      %p314 = por %p312, %p313
      %p315 = scmp.ne.s32.totalorder %s306, %s307
      %p316 = scmp.eq.s32.totalorder %s46, 0
      %p317 = por %p315, %p316
      %p318 = scmp.ne.s32.totalorder %s306, %s307
      %p319 = scmp.eq.s32.totalorder %s47, 1
      %p320 = por %p318, %p319
      %p322 = scmp.ne.s32.totalorder %s307, %s321
      %p323 = scmp.eq.s32.totalorder %s47, 0
      %p324 = por %p322, %p323
      %s326 = sadd.s32 %s325, 1
      %p329 = scmp.eq.s32.totalorder %s41, 1
      %p330 = scmp.ne.s32.totalorder %s325, %s327
      %p331 = scmp.eq.s32.totalorder %s41, 0
      %p332 = por %p330, %p331
      %p333 = scmp.ne.s32.totalorder %s325, %s327
      %p334 = scmp.eq.s32.totalorder %s46, 1
      %p335 = por %p333, %p334
      %p336 = scmp.ne.s32.totalorder %s327, %s328
      %p337 = scmp.eq.s32.totalorder %s46, 0
      %p338 = por %p336, %p337
      %p339 = scmp.ne.s32.totalorder %s327, %s328
      %p340 = scmp.eq.s32.totalorder %s47, 1
      %p341 = por %p339, %p340
      %p343 = scmp.ne.s32.totalorder %s328, %s342
      %p344 = scmp.eq.s32.totalorder %s47, 0
      %p345 = por %p343, %p344
      %s347 = sadd.s32 %s346, 1
      %p350 = scmp.eq.s32.totalorder %s41, 1
      %p351 = scmp.ne.s32.totalorder %s346, %s348
      %p352 = scmp.eq.s32.totalorder %s41, 0
      %p353 = por %p351, %p352
      %p354 = scmp.ne.s32.totalorder %s346, %s348
      %p355 = scmp.eq.s32.totalorder %s46, 1
      %p356 = por %p354, %p355
      %p357 = scmp.ne.s32.totalorder %s348, %s349
      %p358 = scmp.eq.s32.totalorder %s46, 0
      %p359 = por %p357, %p358
      %p360 = scmp.ne.s32.totalorder %s348, %s349
      %p361 = scmp.eq.s32.totalorder %s47, 1
      %p362 = por %p360, %p361
      %p364 = scmp.ne.s32.totalorder %s349, %s363
      %p365 = scmp.eq.s32.totalorder %s47, 0
      %p366 = por %p364, %p365
      %s368 = sadd.s32 %s367, 1
      %p371 = scmp.eq.s32.totalorder %s41, 1
      %p372 = scmp.ne.s32.totalorder %s367, %s369
      %p373 = scmp.eq.s32.totalorder %s41, 0
      %p374 = por %p372, %p373
      %p375 = scmp.ne.s32.totalorder %s367, %s369
      %p376 = scmp.eq.s32.totalorder %s46, 1
      %p377 = por %p375, %p376
      %p378 = scmp.ne.s32.totalorder %s369, %s370
      %p379 = scmp.eq.s32.totalorder %s46, 0
      %p380 = por %p378, %p379
      %p381 = scmp.ne.s32.totalorder %s369, %s370
      %p382 = scmp.eq.s32.totalorder %s47, 1
      %p383 = por %p381, %p382
      %p385 = scmp.ne.s32.totalorder %s370, %s384
      %p386 = scmp.eq.s32.totalorder %s47, 0
      %p387 = por %p385, %p386
      %s389 = sadd.s32 %s388, 1
      %p392 = scmp.eq.s32.totalorder %s41, 1
      %p393 = scmp.ne.s32.totalorder %s388, %s390
      %p394 = scmp.eq.s32.totalorder %s41, 0
      %p395 = por %p393, %p394
      %p396 = scmp.ne.s32.totalorder %s388, %s390
      %p397 = scmp.eq.s32.totalorder %s46, 1
      %p398 = por %p396, %p397
      %p399 = scmp.ne.s32.totalorder %s390, %s391
      %p400 = scmp.eq.s32.totalorder %s46, 0
      %p401 = por %p399, %p400
      %p402 = scmp.ne.s32.totalorder %s390, %s391
      %p403 = scmp.eq.s32.totalorder %s47, 1
      %p404 = por %p402, %p403
      %p406 = scmp.ne.s32.totalorder %s391, %s405
      %p407 = scmp.eq.s32.totalorder %s47, 0
      %p408 = por %p406, %p407
      %s410 = sadd.s32 %s409, 1
      %p413 = scmp.eq.s32.totalorder %s41, 1
      %p414 = scmp.ne.s32.totalorder %s409, %s411
      %p415 = scmp.eq.s32.totalorder %s41, 0
      %p416 = por %p414, %p415
      %p417 = scmp.ne.s32.totalorder %s409, %s411
      %p418 = scmp.eq.s32.totalorder %s46, 1
      %p419 = por %p417, %p418
      %p420 = scmp.ne.s32.totalorder %s411, %s412
      %p421 = scmp.eq.s32.totalorder %s46, 0
      %p422 = por %p420, %p421
      %p423 = scmp.ne.s32.totalorder %s411, %s412
      %p424 = scmp.eq.s32.totalorder %s47, 1
      %p425 = por %p423, %p424
      %p427 = scmp.ne.s32.totalorder %s412, %s426
      %p428 = scmp.eq.s32.totalorder %s47, 0
      %p429 = por %p427, %p428
      %s431 = sadd.s32 %s430, 1
      %p434 = scmp.eq.s32.totalorder %s41, 1
      %p435 = scmp.ne.s32.totalorder %s430, %s432
      %p436 = scmp.eq.s32.totalorder %s41, 0
      %p437 = por %p435, %p436
      %p438 = scmp.ne.s32.totalorder %s430, %s432
      %p439 = scmp.eq.s32.totalorder %s46, 1
      %p440 = por %p438, %p439
      %p441 = scmp.ne.s32.totalorder %s432, %s433
      %p442 = scmp.eq.s32.totalorder %s46, 0
      %p443 = por %p441, %p442
      %p444 = scmp.ne.s32.totalorder %s432, %s433
      %p445 = scmp.eq.s32.totalorder %s47, 1
      %p446 = por %p444, %p445
      %p448 = scmp.ne.s32.totalorder %s433, %s447
      %p449 = scmp.eq.s32.totalorder %s47, 0
      %p450 = por %p448, %p449
      %s451 = ssub.s32 %s48, %s60
      %s452 = ssub.s32 %s49, %s56
      %s453 = sor.u32 %s451, %s452
      %p454 = scmp.eq.s32.totalorder %s453, 0
      %s456 = sadd.s32 %s455, 1
      %s457 = scalar_select %p454, %s455, %s456
      %p460 = pneg %p454
      %p461 = scmp.eq.s32.totalorder %s41, 1
      %p462 = por %p460, %p461
      %p463 = scmp.ne.s32.totalorder %s455, %s458
      %p464 = scmp.eq.s32.totalorder %s41, 0
      %p465 = por %p463, %p464
      %p466 = scmp.ne.s32.totalorder %s455, %s458
      %p467 = scmp.eq.s32.totalorder %s46, 1
      %p468 = por %p466, %p467
      %p469 = scmp.ne.s32.totalorder %s458, %s459
      %p470 = scmp.eq.s32.totalorder %s46, 0
      %p471 = por %p469, %p470
      %p472 = scmp.ne.s32.totalorder %s458, %s459
      %p473 = scmp.eq.s32.totalorder %s47, 1
      %p474 = por %p472, %p473
      %p476 = scmp.ne.s32.totalorder %s459, %s475
      %p477 = scmp.eq.s32.totalorder %s47, 0
      %p478 = por %p476, %p477
      %p479 = scmp.le.s32.totalorder 1, %s41
      %p480 = scmp.lt.s32.totalorder %s41, 3
      %p481 = pnand %p479, %p480
      %p482 = pneg %p481
      // Predicated region
      $region9: #{tpu_custom_call.1} parent=5 // pred_check
        _
      $region10: #{tpu_custom_call.1} parent=5 // pred_check_branch
        %484 = sbr.rel (%p481) target = $region12
      $region11: #{tpu_custom_call.1} parent=5 // pred_region
        %s485 = ssub.s32 %s41, 1
        // Predicated region
        $region13: #{tpu_custom_call.1} parent=11 // pred_check
          %p486 = pneg %p128
        $region14: #{tpu_custom_call.1} parent=11 // pred_check_branch
          %488 = sbr.rel (%p486) target = $region16
        $region15: #{tpu_custom_call.1} parent=11 // pred_region
          %s490 = ssub.s32 16, 16
          %491 = vsyncadd [#allocation6], %s490
          %s493 = sshll.u32 [#allocation7], 4
          %s494 = int_to_ptr.vmem [resolvable:$true] %s493
          %496 = dma.hbm_to_vmem [thread:$0]  %s2, 16, %s494, [#allocation6]
        $region16: #{tpu_custom_call.1} parent=11 // pred_fallthru
          _
        // Predicated region
        $region17: #{tpu_custom_call.1} parent=11 // pred_check
          %p497 = pneg %p149
        $region18: #{tpu_custom_call.1} parent=11 // pred_check_branch
          %499 = sbr.rel (%p497) target = $region20
        $region19: #{tpu_custom_call.1} parent=11 // pred_region
          %s501 = ssub.s32 16, 16
          %502 = vsyncadd [#allocation9], %s501
          %s504 = sshll.u32 [#allocation8], 4
          %s505 = int_to_ptr.vmem [resolvable:$true] %s504
          %507 = dma.hbm_to_vmem [thread:$0]  %s3, 16, %s505, [#allocation9]
        $region20: #{tpu_custom_call.1} parent=11 // pred_fallthru
          _
        // Predicated region
        $region21: #{tpu_custom_call.1} parent=11 // pred_check
          %p508 = pneg %p170
        $region22: #{tpu_custom_call.1} parent=11 // pred_check_branch
          %510 = sbr.rel (%p508) target = $region24
        $region23: #{tpu_custom_call.1} parent=11 // pred_region
          %s512 = ssub.s32 1024, 1024
          %513 = vsyncadd [#allocation9], %s512
          %s514 = sshll.u32 [#allocation10], 4
          %s515 = int_to_ptr.vmem [resolvable:$true] %s514
          %520 = dma.hbm_to_vmem [thread:$0]  %s4, 1024, %s515, [#allocation9], 64, 64, 4
        $region24: #{tpu_custom_call.1} parent=11 // pred_fallthru
          _
        // Predicated region
        $region25: #{tpu_custom_call.1} parent=11 // pred_check
          %p521 = pneg %p191
        $region26: #{tpu_custom_call.1} parent=11 // pred_check_branch
          %523 = sbr.rel (%p521) target = $region28
        $region27: #{tpu_custom_call.1} parent=11 // pred_region
          %s525 = ssub.s32 64, 64
          %526 = vsyncadd [#allocation12], %s525
          %s527 = sshll.u32 [#allocation11], 4
          %s528 = int_to_ptr.vmem [resolvable:$true] %s527
          %533 = dma.hbm_to_vmem [thread:$0]  %s5, 64, %s528, [#allocation12], 16, 16, 1
        $region28: #{tpu_custom_call.1} parent=11 // pred_fallthru
          _
        // Predicated region
        $region29: #{tpu_custom_call.1} parent=11 // pred_check
          %p534 = pneg %p212
        $region30: #{tpu_custom_call.1} parent=11 // pred_check_branch
          %536 = sbr.rel (%p534) target = $region32
        $region31: #{tpu_custom_call.1} parent=11 // pred_region
          %s538 = ssub.s32 1024, 1024
          %539 = vsyncadd [#allocation12], %s538
          %s540 = sshll.u32 [#allocation13], 4
          %s541 = int_to_ptr.vmem [resolvable:$true] %s540
          %546 = dma.hbm_to_vmem [thread:$0]  %s6, 1024, %s541, [#allocation12], 64, 64, 4
        $region32: #{tpu_custom_call.1} parent=11 // pred_fallthru
          _
        // Predicated region
        $region33: #{tpu_custom_call.1} parent=11 // pred_check
          %p547 = pneg %p233
        $region34: #{tpu_custom_call.1} parent=11 // pred_check_branch
          %549 = sbr.rel (%p547) target = $region36
        $region35: #{tpu_custom_call.1} parent=11 // pred_region
          %s551 = ssub.s32 64, 64
          %552 = vsyncadd [#allocation15], %s551
          %s553 = sshll.u32 [#allocation14], 4
          %s554 = int_to_ptr.vmem [resolvable:$true] %s553
          %559 = dma.hbm_to_vmem [thread:$0]  %s7, 64, %s554, [#allocation15], 16, 16, 1
        $region36: #{tpu_custom_call.1} parent=11 // pred_fallthru
          _
        // Predicated region
        $region37: #{tpu_custom_call.1} parent=11 // pred_check
          %p560 = pneg %p254
        $region38: #{tpu_custom_call.1} parent=11 // pred_check_branch
          %562 = sbr.rel (%p560) target = $region40
        $region39: #{tpu_custom_call.1} parent=11 // pred_region
          %s564 = ssub.s32 1024, 1024
          %565 = vsyncadd [#allocation15], %s564
          %s566 = sshll.u32 [#allocation16], 4
          %s567 = int_to_ptr.vmem [resolvable:$true] %s566
          %572 = dma.hbm_to_vmem [thread:$0]  %s8, 1024, %s567, [#allocation15], 64, 64, 4
        $region40: #{tpu_custom_call.1} parent=11 // pred_fallthru
          _
        // Predicated region
        $region41: #{tpu_custom_call.1} parent=11 // pred_check
          %p573 = pneg %p275
        $region42: #{tpu_custom_call.1} parent=11 // pred_check_branch
          %575 = sbr.rel (%p573) target = $region44
        $region43: #{tpu_custom_call.1} parent=11 // pred_region
          %s577 = ssub.s32 64, 64
          %578 = vsyncadd [#allocation18], %s577
          %s579 = sshll.u32 [#allocation17], 4
          %s580 = int_to_ptr.vmem [resolvable:$true] %s579
          %585 = dma.hbm_to_vmem [thread:$0]  %s9, 64, %s580, [#allocation18], 16, 16, 1
        $region44: #{tpu_custom_call.1} parent=11 // pred_fallthru
          _
        // Predicated region
        $region45: #{tpu_custom_call.1} parent=11 // pred_check
          %p586 = pneg %p296
        $region46: #{tpu_custom_call.1} parent=11 // pred_check_branch
          %588 = sbr.rel (%p586) target = $region48
        $region47: #{tpu_custom_call.1} parent=11 // pred_region
          %s590 = ssub.s32 256, 256
          %591 = vsyncadd [#allocation18], %s590
          %s592 = sshll.u32 [#allocation19], 4
          %s593 = int_to_ptr.vmem [resolvable:$true] %s592
          %598 = dma.hbm_to_vmem [thread:$0]  %s10, 256, %s593, [#allocation18], 64, 64, 4
        $region48: #{tpu_custom_call.1} parent=11 // pred_fallthru
          _
        // Predicated region
        $region49: #{tpu_custom_call.1} parent=11 // pred_check
          %p599 = pneg %p317
        $region50: #{tpu_custom_call.1} parent=11 // pred_check_branch
          %601 = sbr.rel (%p599) target = $region52
        $region51: #{tpu_custom_call.1} parent=11 // pred_region
          %s603 = ssub.s32 16, 16
          %604 = vsyncadd [#allocation21], %s603
          %s606 = sshll.u32 [#allocation20], 4
          %s607 = int_to_ptr.vmem [resolvable:$true] %s606
          %609 = dma.hbm_to_vmem [thread:$0]  %s11, 16, %s607, [#allocation21]
        $region52: #{tpu_custom_call.1} parent=11 // pred_fallthru
          _
        // Predicated region
        $region53: #{tpu_custom_call.1} parent=11 // pred_check
          %p610 = pneg %p338
        $region54: #{tpu_custom_call.1} parent=11 // pred_check_branch
          %612 = sbr.rel (%p610) target = $region56
        $region55: #{tpu_custom_call.1} parent=11 // pred_region
          %s614 = ssub.s32 16, 16
          %615 = vsyncadd [#allocation21], %s614
          %s617 = sshll.u32 [#allocation22], 4
          %s618 = int_to_ptr.vmem [resolvable:$true] %s617
          %620 = dma.hbm_to_vmem [thread:$0]  %s12, 16, %s618, [#allocation21]
        $region56: #{tpu_custom_call.1} parent=11 // pred_fallthru
          _
        // Predicated region
        $region57: #{tpu_custom_call.1} parent=11 // pred_check
          %p621 = pneg %p359
        $region58: #{tpu_custom_call.1} parent=11 // pred_check_branch
          %623 = sbr.rel (%p621) target = $region60
        $region59: #{tpu_custom_call.1} parent=11 // pred_region
          %s625 = ssub.s32 16, 16
          %626 = vsyncadd [#allocation24], %s625
          %s628 = sshll.u32 [#allocation23], 4
          %s629 = int_to_ptr.vmem [resolvable:$true] %s628
          %631 = dma.hbm_to_vmem [thread:$0]  %s13, 16, %s629, [#allocation24]
        $region60: #{tpu_custom_call.1} parent=11 // pred_fallthru
          _
        // Predicated region
        $region61: #{tpu_custom_call.1} parent=11 // pred_check
          %p632 = pneg %p380
        $region62: #{tpu_custom_call.1} parent=11 // pred_check_branch
          %634 = sbr.rel (%p632) target = $region64
        $region63: #{tpu_custom_call.1} parent=11 // pred_region
          %s636 = ssub.s32 256, 256
          %637 = vsyncadd [#allocation24], %s636
          %s638 = sshll.u32 [#allocation25], 4
          %s639 = int_to_ptr.vmem [resolvable:$true] %s638
          %644 = dma.hbm_to_vmem [thread:$0]  %s14, 256, %s639, [#allocation24], 64, 64, 4
        $region64: #{tpu_custom_call.1} parent=11 // pred_fallthru
          _
        // Predicated region
        $region65: #{tpu_custom_call.1} parent=11 // pred_check
          %p645 = pneg %p401
        $region66: #{tpu_custom_call.1} parent=11 // pred_check_branch
          %647 = sbr.rel (%p645) target = $region68
        $region67: #{tpu_custom_call.1} parent=11 // pred_region
          %s649 = ssub.s32 16, 16
          %650 = vsyncadd [#allocation27], %s649
          %s652 = sshll.u32 [#allocation26], 4
          %s653 = int_to_ptr.vmem [resolvable:$true] %s652
          %655 = dma.hbm_to_vmem [thread:$0]  %s15, 16, %s653, [#allocation27]
        $region68: #{tpu_custom_call.1} parent=11 // pred_fallthru
          _
        // Predicated region
        $region69: #{tpu_custom_call.1} parent=11 // pred_check
          %p656 = pneg %p422
        $region70: #{tpu_custom_call.1} parent=11 // pred_check_branch
          %658 = sbr.rel (%p656) target = $region72
        $region71: #{tpu_custom_call.1} parent=11 // pred_region
          %s660 = ssub.s32 512, 512
          %661 = vsyncadd [#allocation27], %s660
          %s662 = sshll.u32 [#allocation28], 4
          %s663 = int_to_ptr.vmem [resolvable:$true] %s662
          %668 = dma.hbm_to_vmem [thread:$0]  %s16, 512, %s663, [#allocation27], 64, 64, 4
        $region72: #{tpu_custom_call.1} parent=11 // pred_fallthru
          _
        // Predicated region
        $region73: #{tpu_custom_call.1} parent=11 // pred_check
          %p669 = pneg %p443
        $region74: #{tpu_custom_call.1} parent=11 // pred_check_branch
          %671 = sbr.rel (%p669) target = $region76
        $region75: #{tpu_custom_call.1} parent=11 // pred_region
          %s673 = ssub.s32 16, 16
          %674 = vsyncadd [#allocation30], %s673
          %s676 = sshll.u32 [#allocation29], 4
          %s677 = int_to_ptr.vmem [resolvable:$true] %s676
          %679 = dma.hbm_to_vmem [thread:$0]  %s17, 16, %s677, [#allocation30]
        $region76: #{tpu_custom_call.1} parent=11 // pred_fallthru
          _
      $region12: #{tpu_custom_call.1} parent=5 // pred_fallthru
        _
      %p680 = scmp.lt.s32.totalorder %s41, 2
      // Predicated region
      $region77: #{tpu_custom_call.1} parent=5 // pred_check
        %p681 = pneg %p680
      $region78: #{tpu_custom_call.1} parent=5 // pred_check_branch
        %683 = sbr.rel (%p681) target = $region80
      $region79: #{tpu_custom_call.1} parent=5 // pred_region
        // Predicated region
        $region81: #{tpu_custom_call.1} parent=79 // pred_check
          %p684 = pneg %p75
        $region82: #{tpu_custom_call.1} parent=79 // pred_check_branch
          %686 = sbr.rel (%p684) target = $region84
        $region83: #{tpu_custom_call.1} parent=79 // pred_region
          %s687 = sand.u32 %s65, 1
          %s688 = scalar_lea.sflag [#allocation3], %s687
          %s689 = sand.u32 %s65, 1
          %s690 = smul.addr %s689, 8
          %s691 = scalar_lea.vmem [#allocation2], %s690
          %s693 = ssub.s32 128, 128
          %694 = vsyncadd %s688, %s693
          %s695 = sadd.s32 %s49, %s48
          %s696 = smul.addr %s695, 128
          %s697 = scalar_lea.hbm %s0, %s696
          %s699 = sshll.u32 %s691, 4
          %s700 = int_to_ptr.vmem [resolvable:$true] %s699
          %702 = dma.hbm_to_vmem [thread:$0]  %s697, 128, %s700, %s688
        $region84: #{tpu_custom_call.1} parent=79 // pred_fallthru
          _
        // Predicated region
        $region85: #{tpu_custom_call.1} parent=79 // pred_check
          %p703 = pneg %p101
        $region86: #{tpu_custom_call.1} parent=79 // pred_check_branch
          %705 = sbr.rel (%p703) target = $region88
        $region87: #{tpu_custom_call.1} parent=79 // pred_region
          %s706 = sand.u32 %s41, 1
          %s707 = scalar_lea.sflag [#allocation6], %s706
          %s708 = sand.u32 %s91, 1
          %s709 = smul.addr %s708, 8
          %s710 = scalar_lea.vmem [#allocation5], %s709
          %s712 = ssub.s32 128, 128
          %713 = vsyncadd %s707, %s712
          %s714 = smul.addr %s48, 128
          %s715 = scalar_lea.hbm %s1, %s714
          %s717 = sshll.u32 %s710, 4
          %s718 = int_to_ptr.vmem [resolvable:$true] %s717
          %720 = dma.hbm_to_vmem [thread:$0]  %s715, 128, %s718, %s707
        $region88: #{tpu_custom_call.1} parent=79 // pred_fallthru
          _
      $region80: #{tpu_custom_call.1} parent=5 // pred_fallthru
        _
      %p721 = scmp.le.s32.totalorder 1, %s41
      %p722 = scmp.lt.s32.totalorder %s41, 3
      %p723 = pnand %p721, %p722
      %p724 = pneg %p723
      // Predicated region
      $region89: #{tpu_custom_call.1} parent=5 // pred_check
        _
      $region90: #{tpu_custom_call.1} parent=5 // pred_check_branch
        %726 = sbr.rel (%p723) target = $region92
      $region91: #{tpu_custom_call.1} parent=5 // pred_region
        %s727 = ssub.s32 %s41, 1
        %s728 = sand.u32 %s68, 1
        %s729 = scalar_lea.sflag [#allocation3], %s728
        %s730 = sand.u32 %s68, 1
        %s731 = smul.addr %s730, 8
        %s732 = scalar_lea.vmem [#allocation2], %s731
        // Predicated region
        $region93: #{tpu_custom_call.1} parent=91 // pred_check
          %p733 = pneg %p81
        $region94: #{tpu_custom_call.1} parent=91 // pred_check_branch
          %735 = sbr.rel (%p733) target = $region96
        $region95: #{tpu_custom_call.1} parent=91 // pred_region
          %736 = dma.done %s729, 128
        $region96: #{tpu_custom_call.1} parent=91 // pred_fallthru
          _
        %s737 = sand.u32 %s46, 1
        %s738 = scalar_lea.sflag [#allocation6], %s737
        %s739 = sand.u32 %s94, 1
        %s740 = smul.addr %s739, 8
        %s741 = scalar_lea.vmem [#allocation5], %s740
        // Predicated region
        $region97: #{tpu_custom_call.1} parent=91 // pred_check
          %p742 = pneg %p107
        $region98: #{tpu_custom_call.1} parent=91 // pred_check_branch
          %744 = sbr.rel (%p742) target = $region100
        $region99: #{tpu_custom_call.1} parent=91 // pred_region
          %745 = dma.done %s738, 128
        $region100: #{tpu_custom_call.1} parent=91 // pred_fallthru
          _
        // Predicated region
        $region101: #{tpu_custom_call.1} parent=91 // pred_check
          %p746 = pneg %p128
        $region102: #{tpu_custom_call.1} parent=91 // pred_check_branch
          %748 = sbr.rel (%p746) target = $region104
        $region103: #{tpu_custom_call.1} parent=91 // pred_region
          %749 = dma.done [#allocation6], 16
        $region104: #{tpu_custom_call.1} parent=91 // pred_fallthru
          _
        // Predicated region
        $region105: #{tpu_custom_call.1} parent=91 // pred_check
          %p750 = pneg %p149
        $region106: #{tpu_custom_call.1} parent=91 // pred_check_branch
          %752 = sbr.rel (%p750) target = $region108
        $region107: #{tpu_custom_call.1} parent=91 // pred_region
          %753 = dma.done [#allocation9], 16
        $region108: #{tpu_custom_call.1} parent=91 // pred_fallthru
          _
        // Predicated region
        $region109: #{tpu_custom_call.1} parent=91 // pred_check
          %p754 = pneg %p170
        $region110: #{tpu_custom_call.1} parent=91 // pred_check_branch
          %756 = sbr.rel (%p754) target = $region112
        $region111: #{tpu_custom_call.1} parent=91 // pred_region
          %757 = dma.done [#allocation9], 1024
        $region112: #{tpu_custom_call.1} parent=91 // pred_fallthru
          _
        // Predicated region
        $region113: #{tpu_custom_call.1} parent=91 // pred_check
          %p758 = pneg %p191
        $region114: #{tpu_custom_call.1} parent=91 // pred_check_branch
          %760 = sbr.rel (%p758) target = $region116
        $region115: #{tpu_custom_call.1} parent=91 // pred_region
          %761 = dma.done [#allocation12], 64
        $region116: #{tpu_custom_call.1} parent=91 // pred_fallthru
          _
        // Predicated region
        $region117: #{tpu_custom_call.1} parent=91 // pred_check
          %p762 = pneg %p212
        $region118: #{tpu_custom_call.1} parent=91 // pred_check_branch
          %764 = sbr.rel (%p762) target = $region120
        $region119: #{tpu_custom_call.1} parent=91 // pred_region
          %765 = dma.done [#allocation12], 1024
        $region120: #{tpu_custom_call.1} parent=91 // pred_fallthru
          _
        // Predicated region
        $region121: #{tpu_custom_call.1} parent=91 // pred_check
          %p766 = pneg %p233
        $region122: #{tpu_custom_call.1} parent=91 // pred_check_branch
          %768 = sbr.rel (%p766) target = $region124
        $region123: #{tpu_custom_call.1} parent=91 // pred_region
          %769 = dma.done [#allocation15], 64
        $region124: #{tpu_custom_call.1} parent=91 // pred_fallthru
          _
        // Predicated region
        $region125: #{tpu_custom_call.1} parent=91 // pred_check
          %p770 = pneg %p254
        $region126: #{tpu_custom_call.1} parent=91 // pred_check_branch
          %772 = sbr.rel (%p770) target = $region128
        $region127: #{tpu_custom_call.1} parent=91 // pred_region
          %773 = dma.done [#allocation15], 1024
        $region128: #{tpu_custom_call.1} parent=91 // pred_fallthru
          _
        // Predicated region
        $region129: #{tpu_custom_call.1} parent=91 // pred_check
          %p774 = pneg %p275
        $region130: #{tpu_custom_call.1} parent=91 // pred_check_branch
          %776 = sbr.rel (%p774) target = $region132
        $region131: #{tpu_custom_call.1} parent=91 // pred_region
          %777 = dma.done [#allocation18], 64
        $region132: #{tpu_custom_call.1} parent=91 // pred_fallthru
          _
        // Predicated region
        $region133: #{tpu_custom_call.1} parent=91 // pred_check
          %p778 = pneg %p296
        $region134: #{tpu_custom_call.1} parent=91 // pred_check_branch
          %780 = sbr.rel (%p778) target = $region136
        $region135: #{tpu_custom_call.1} parent=91 // pred_region
          %781 = dma.done [#allocation18], 256
        $region136: #{tpu_custom_call.1} parent=91 // pred_fallthru
          _
        // Predicated region
        $region137: #{tpu_custom_call.1} parent=91 // pred_check
          %p782 = pneg %p317
        $region138: #{tpu_custom_call.1} parent=91 // pred_check_branch
          %784 = sbr.rel (%p782) target = $region140
        $region139: #{tpu_custom_call.1} parent=91 // pred_region
          %785 = dma.done [#allocation21], 16
        $region140: #{tpu_custom_call.1} parent=91 // pred_fallthru
          _
        // Predicated region
        $region141: #{tpu_custom_call.1} parent=91 // pred_check
          %p786 = pneg %p338
        $region142: #{tpu_custom_call.1} parent=91 // pred_check_branch
          %788 = sbr.rel (%p786) target = $region144
        $region143: #{tpu_custom_call.1} parent=91 // pred_region
          %789 = dma.done [#allocation21], 16
        $region144: #{tpu_custom_call.1} parent=91 // pred_fallthru
          _
        // Predicated region
        $region145: #{tpu_custom_call.1} parent=91 // pred_check
          %p790 = pneg %p359
        $region146: #{tpu_custom_call.1} parent=91 // pred_check_branch
          %792 = sbr.rel (%p790) target = $region148
        $region147: #{tpu_custom_call.1} parent=91 // pred_region
          %793 = dma.done [#allocation24], 16
        $region148: #{tpu_custom_call.1} parent=91 // pred_fallthru
          _
        // Predicated region
        $region149: #{tpu_custom_call.1} parent=91 // pred_check
          %p794 = pneg %p380
        $region150: #{tpu_custom_call.1} parent=91 // pred_check_branch
          %796 = sbr.rel (%p794) target = $region152
        $region151: #{tpu_custom_call.1} parent=91 // pred_region
          %797 = dma.done [#allocation24], 256
        $region152: #{tpu_custom_call.1} parent=91 // pred_fallthru
          _
        // Predicated region
        $region153: #{tpu_custom_call.1} parent=91 // pred_check
          %p798 = pneg %p401
        $region154: #{tpu_custom_call.1} parent=91 // pred_check_branch
          %800 = sbr.rel (%p798) target = $region156
        $region155: #{tpu_custom_call.1} parent=91 // pred_region
          %801 = dma.done [#allocation27], 16
        $region156: #{tpu_custom_call.1} parent=91 // pred_fallthru
          _
        // Predicated region
        $region157: #{tpu_custom_call.1} parent=91 // pred_check
          %p802 = pneg %p422
        $region158: #{tpu_custom_call.1} parent=91 // pred_check_branch
          %804 = sbr.rel (%p802) target = $region160
        $region159: #{tpu_custom_call.1} parent=91 // pred_region
          %805 = dma.done [#allocation27], 512
        $region160: #{tpu_custom_call.1} parent=91 // pred_fallthru
          _
        // Predicated region
        $region161: #{tpu_custom_call.1} parent=91 // pred_check
          %p806 = pneg %p443
        $region162: #{tpu_custom_call.1} parent=91 // pred_check_branch
          %808 = sbr.rel (%p806) target = $region164
        $region163: #{tpu_custom_call.1} parent=91 // pred_region
          %809 = dma.done [#allocation30], 16
        $region164: #{tpu_custom_call.1} parent=91 // pred_fallthru
          _
        %s810 = sand.u32 %s68, 1
        %s811 = scalar_lea.sflag [#allocation3], %s810
        %s812 = sand.u32 %s68, 1
        %s813 = smul.addr %s812, 8
        %s814 = scalar_lea.vmem [#allocation2], %s813
        %p815 = pneg %p81
        %p816 = pneg %p78
        %s817 = sand.u32 %s46, 1
        %s818 = scalar_lea.sflag [#allocation6], %s817
        %s819 = sand.u32 %s94, 1
        %s820 = smul.addr %s819, 8
        %s821 = scalar_lea.vmem [#allocation5], %s820
        %p822 = pneg %p107
        %p823 = pneg %p104
        %p824 = pneg %p128
        %p825 = pneg %p125
        %p826 = pneg %p149
        %p827 = pneg %p146
        %p828 = pneg %p170
        %p829 = pneg %p167
        %p830 = pneg %p191
        %p831 = pneg %p188
        %p832 = pneg %p212
        %p833 = pneg %p209
        %p834 = pneg %p233
        %p835 = pneg %p230
        %p836 = pneg %p254
        %p837 = pneg %p251
        %p838 = pneg %p275
        %p839 = pneg %p272
        %p840 = pneg %p296
        %p841 = pneg %p293
        %p842 = pneg %p317
        %p843 = pneg %p314
        %p844 = pneg %p338
        %p845 = pneg %p335
        %p846 = pneg %p359
        %p847 = pneg %p356
        %p848 = pneg %p380
        %p849 = pneg %p377
        %p850 = pneg %p401
        %p851 = pneg %p398
        %p852 = pneg %p422
        %p853 = pneg %p419
        %p854 = pneg %p443
        %p855 = pneg %p440
        %p856 = pneg %p471
        %p857 = pneg %p468
        %s858 = sand.u32 %s458, 1
        %s859 = scalar_lea.sflag [#allocation4], %s858
        %s860 = sand.u32 %s458, 1
        %s861 = smul.addr %s860, 8
        %s862 = scalar_lea.vmem [#allocation31], %s861
        %v864 = vld [vmem:[%s732] sm:$0xff]
        %v865 = vld [vmem:[%s741] sm:$0xff]
        %v866 = vld [vmem:[#allocation7] sm:$0x1]
        %v867 = vld [vmem:[#allocation8] sm:$0x1]
        %vm868 = vcmask 261120
        %v869 = vsel %vm868, %v864, 0.0
        %870 = vadd.xlane.f32.xlu0 %v869
        %v871 = vpop.xlane.xlu0 %870
        %v872 = vrcp.pop 32.0
        %v873 = vmul.f32 %v871, %v872
        %v874 = vmul.f32 %v864, %v864
        %v875 = vsel %vm868, %v874, 0.0
        %876 = vadd.xlane.f32.xlu0 %v875
        %v877 = vpop.xlane.xlu0 %876
        %v878 = vmul.f32 %v877, %v872
        %v879 = vmul.f32 %v873, %v873
        %v880 = vsub.f32 %v878, %v879
        %v881 = vsub.f32 %v864, %v873
        %v882 = vadd.f32 %v880, 1e-05
        %v883 = vrsqrt.pop %v882
        %v884 = vmul.f32 %v881, %v883
        %v886 = vlaneseq
        %v887 = vshrl.u32 %v886, 7
        %v888 = vsub.s32 0, %v887
        %v889 = vrot.slane %v866, %v888
        %v891 = vmul.f32 %v884, %v889
        %v893 = vlaneseq
        %v894 = vshrl.u32 %v893, 7
        %v895 = vsub.s32 0, %v894
        %v896 = vrot.slane %v867, %v895
        %v898 = vadd.f32 %v891, %v896
        %v899 = vpack.c.bf16 %v898, %v898
        %v900 = vsel %vm868, %v865, 0.0
        %901 = vadd.xlane.f32.xlu0 %v900
        %v902 = vpop.xlane.xlu0 %901
        %v903 = vmul.f32 %v902, %v872
        %v904 = vmul.f32 %v865, %v865
        %v905 = vsel %vm868, %v904, 0.0
        %906 = vadd.xlane.f32.xlu0 %v905
        %v907 = vpop.xlane.xlu0 %906
        %v908 = vmul.f32 %v907, %v872
        %v909 = vmul.f32 %v903, %v903
        %v910 = vsub.f32 %v908, %v909
        %v911 = vsub.f32 %v865, %v903
        %v912 = vadd.f32 %v910, 1e-05
        %v913 = vrsqrt.pop %v912
        %v914 = vmul.f32 %v911, %v913
        %v915 = vmul.f32 %v914, %v889
        %v916 = vadd.f32 %v915, %v896
        %v917 = vpack.c.bf16 %v916, %v916
        %v918 = vld [vmem:[#allocation10] sm:$0xf]
        %v919 = vld [vmem:[#allocation10 + $0x4] sm:$0xf]
        %v920 = vld [vmem:[#allocation10 + $0x8] sm:$0xf]
        %v921 = vld [vmem:[#allocation10 + $0xc] sm:$0xf]
        %v922 = vld [vmem:[#allocation10 + $0x10] sm:$0xf]
        %v923 = vld [vmem:[#allocation10 + $0x14] sm:$0xf]
        %v924 = vld [vmem:[#allocation10 + $0x18] sm:$0xf]
        %v925 = vld [vmem:[#allocation10 + $0x1c] sm:$0xf]
        %v926 = vld [vmem:[#allocation10 + $0x20] sm:$0xf]
        %v927 = vld [vmem:[#allocation10 + $0x24] sm:$0xf]
        %v928 = vld [vmem:[#allocation10 + $0x28] sm:$0xf]
        %v929 = vld [vmem:[#allocation10 + $0x2c] sm:$0xf]
        %v930 = vld [vmem:[#allocation10 + $0x30] sm:$0xf]
        %v931 = vld [vmem:[#allocation10 + $0x34] sm:$0xf]
        %v932 = vld [vmem:[#allocation10 + $0x38] sm:$0xf]
        %v933 = vld [vmem:[#allocation10 + $0x3c] sm:$0xf]
        %v934 = vld [vmem:[#allocation11] sm:$0x1]
        %v935 = vld [vmem:[#allocation11 + $0x1] sm:$0x1]
        %v936 = vld [vmem:[#allocation11 + $0x2] sm:$0x1]
        %v937 = vld [vmem:[#allocation11 + $0x3] sm:$0x1]
        %v942 = vlaneseq
        %v943 = vshrl.u32 %v942, 7
        %v944 = vsub.s32 0, %v943
        %v945 = vrot.slane %v934, %v944
        %v946 = vlaneseq
        %v947 = vshrl.u32 %v946, 7
        %v948 = vsub.s32 0, %v947
        %v949 = vrot.slane %v935, %v948
        %v950 = vlaneseq
        %v951 = vshrl.u32 %v950, 7
        %v952 = vsub.s32 0, %v951
        %v953 = vrot.slane %v936, %v952
        %v954 = vlaneseq
        %v955 = vshrl.u32 %v954, 7
        %v956 = vsub.s32 0, %v955
        %v957 = vrot.slane %v937, %v956
        %v966 = vunpack.c.l.b16 %v918
        %v967 = vunpack.c.l.b16 %v919
        %v968 = vunpack.c.l.b16 %v920
        %v969 = vunpack.c.l.b16 %v921
        %v970 = vpack.c.b16 %v967, %v966
        %v971 = vpack.c.b16 %v969, %v968
        %v975 = vsel %vm868, %v899, 0
        %977 = vmatprep.subr.bf16.mxu0 0
        %978 = vmatpush1.bf16.msra.mxu0 %v970
        %979 = vmatprep.subr.bf16.mxu0 0
        %980 = vmatpush1.bf16.msra.mxu0 %v971
        %981 = vmatprep.subr.bf16.mxu0 0
        %982 = vmatpush1.bf16.msra.mxu0 0
        %983 = vmatprep.subr.bf16.mxu0 0
        %984 = vmatpush1.bf16.msra.mxu0 0
        %985 = vmatprep.subr.bf16.mxu0 0
        %986 = vmatpush1.bf16.msra.mxu0 0
        %987 = vmatprep.subr.bf16.mxu0 0
        %988 = vmatpush1.bf16.msra.mxu0 0
        %989 = vmatprep.subr.bf16.mxu0 0
        %990 = vmatpush1.bf16.msra.mxu0 0
        %991 = vmatprep.subr.bf16.mxu0 0
        %992 = vmatpush1.bf16.msra.mxu0 0
        %993 = vmatprep.subr.bf16.mxu0 0
        %994 = vmatpush1.bf16.msra.mxu0 0
        %995 = vmatprep.subr.bf16.mxu0 0
        %996 = vmatpush1.bf16.msra.mxu0 0
        %997 = vmatprep.subr.bf16.mxu0 0
        %998 = vmatpush1.bf16.msra.mxu0 0
        %999 = vmatprep.subr.bf16.mxu0 0
        %1000 = vmatpush1.bf16.msra.mxu0 0
        %1001 = vmatprep.subr.bf16.mxu0 0
        %1002 = vmatpush1.bf16.msra.mxu0 0
        %1003 = vmatprep.subr.bf16.mxu0 0
        %1004 = vmatpush1.bf16.msra.mxu0 0
        %1005 = vmatprep.subr.bf16.mxu0 0
        %1006 = vmatpush1.bf16.msra.mxu0 0
        %1007 = vmatprep.subr.bf16.mxu0 0
        %1008 = vmatpush1.bf16.msra.mxu0 0
        %1009 = vmatprep.mubr.bf16.mxu0 0
        %1010 = vmatmul.mubr.bf16.gmra.mrb[0].mxu0 %v975
        %v1011 = vpop.f32.mrb[0].mxu0
        %v1012 = vadd.f32 %v945, %v1011
        %v1013 = vpop.f32.mrb[0].mxu0
        %v1014 = vpop.f32.mrb[0].mxu0
        %v1015 = vpop.f32.mrb[0].mxu0
        %1016 = vdwg.mxu0
        %v1021 = vunpack.c.l.b16 %v922
        %v1022 = vunpack.c.l.b16 %v923
        %v1023 = vunpack.c.l.b16 %v924
        %v1024 = vunpack.c.l.b16 %v925
        %v1025 = vpack.c.b16 %v1022, %v1021
        %v1026 = vpack.c.b16 %v1024, %v1023
        %1029 = vmatprep.subr.bf16.mxu0 0
        %1030 = vmatpush1.bf16.msra.mxu0 %v1025
        %1031 = vmatprep.subr.bf16.mxu0 0
        %1032 = vmatpush1.bf16.msra.mxu0 %v1026
        %1033 = vmatprep.subr.bf16.mxu0 0
        %1034 = vmatpush1.bf16.msra.mxu0 0
        %1035 = vmatprep.subr.bf16.mxu0 0
        %1036 = vmatpush1.bf16.msra.mxu0 0
        %1037 = vmatprep.subr.bf16.mxu0 0
        %1038 = vmatpush1.bf16.msra.mxu0 0
        %1039 = vmatprep.subr.bf16.mxu0 0
        %1040 = vmatpush1.bf16.msra.mxu0 0
        %1041 = vmatprep.subr.bf16.mxu0 0
        %1042 = vmatpush1.bf16.msra.mxu0 0
        %1043 = vmatprep.subr.bf16.mxu0 0
        %1044 = vmatpush1.bf16.msra.mxu0 0
        %1045 = vmatprep.subr.bf16.mxu0 0
        %1046 = vmatpush1.bf16.msra.mxu0 0
        %1047 = vmatprep.subr.bf16.mxu0 0
        %1048 = vmatpush1.bf16.msra.mxu0 0
        %1049 = vmatprep.subr.bf16.mxu0 0
        %1050 = vmatpush1.bf16.msra.mxu0 0
        %1051 = vmatprep.subr.bf16.mxu0 0
        %1052 = vmatpush1.bf16.msra.mxu0 0
        %1053 = vmatprep.subr.bf16.mxu0 0
        %1054 = vmatpush1.bf16.msra.mxu0 0
        %1055 = vmatprep.subr.bf16.mxu0 0
        %1056 = vmatpush1.bf16.msra.mxu0 0
        %1057 = vmatprep.subr.bf16.mxu0 0
        %1058 = vmatpush1.bf16.msra.mxu0 0
        %1059 = vmatprep.subr.bf16.mxu0 0
        %1060 = vmatpush1.bf16.msra.mxu0 0
        %1061 = vmatprep.mubr.bf16.mxu0 0
        %1062 = vmatmul.mubr.bf16.gmra.mrb[0].mxu0 %v975
        %v1063 = vpop.f32.mrb[0].mxu0
        %v1064 = vadd.f32 %v949, %v1063
        %v1065 = vpop.f32.mrb[0].mxu0
        %v1066 = vpop.f32.mrb[0].mxu0
        %v1067 = vpop.f32.mrb[0].mxu0
        %1068 = vdwg.mxu0
        %v1073 = vunpack.c.l.b16 %v926
        %v1074 = vunpack.c.l.b16 %v927
        %v1075 = vunpack.c.l.b16 %v928
        %v1076 = vunpack.c.l.b16 %v929
        %v1077 = vpack.c.b16 %v1074, %v1073
        %v1078 = vpack.c.b16 %v1076, %v1075
        %1081 = vmatprep.subr.bf16.mxu0 0
        %1082 = vmatpush1.bf16.msra.mxu0 %v1077
        %1083 = vmatprep.subr.bf16.mxu0 0
        %1084 = vmatpush1.bf16.msra.mxu0 %v1078
        %1085 = vmatprep.subr.bf16.mxu0 0
        %1086 = vmatpush1.bf16.msra.mxu0 0
        %1087 = vmatprep.subr.bf16.mxu0 0
        %1088 = vmatpush1.bf16.msra.mxu0 0
        %1089 = vmatprep.subr.bf16.mxu0 0
        %1090 = vmatpush1.bf16.msra.mxu0 0
        %1091 = vmatprep.subr.bf16.mxu0 0
        %1092 = vmatpush1.bf16.msra.mxu0 0
        %1093 = vmatprep.subr.bf16.mxu0 0
        %1094 = vmatpush1.bf16.msra.mxu0 0
        %1095 = vmatprep.subr.bf16.mxu0 0
        %1096 = vmatpush1.bf16.msra.mxu0 0
        %1097 = vmatprep.subr.bf16.mxu0 0
        %1098 = vmatpush1.bf16.msra.mxu0 0
        %1099 = vmatprep.subr.bf16.mxu0 0
        %1100 = vmatpush1.bf16.msra.mxu0 0
        %1101 = vmatprep.subr.bf16.mxu0 0
        %1102 = vmatpush1.bf16.msra.mxu0 0
        %1103 = vmatprep.subr.bf16.mxu0 0
        %1104 = vmatpush1.bf16.msra.mxu0 0
        %1105 = vmatprep.subr.bf16.mxu0 0
        %1106 = vmatpush1.bf16.msra.mxu0 0
        %1107 = vmatprep.subr.bf16.mxu0 0
        %1108 = vmatpush1.bf16.msra.mxu0 0
        %1109 = vmatprep.subr.bf16.mxu0 0
        %1110 = vmatpush1.bf16.msra.mxu0 0
        %1111 = vmatprep.subr.bf16.mxu0 0
        %1112 = vmatpush1.bf16.msra.mxu0 0
        %1113 = vmatprep.mubr.bf16.mxu0 0
        %1114 = vmatmul.mubr.bf16.gmra.mrb[0].mxu0 %v975
        %v1115 = vpop.f32.mrb[0].mxu0
        %v1116 = vadd.f32 %v953, %v1115
        %v1117 = vpop.f32.mrb[0].mxu0
        %v1118 = vpop.f32.mrb[0].mxu0
        %v1119 = vpop.f32.mrb[0].mxu0
        %1120 = vdwg.mxu0
        %v1125 = vunpack.c.l.b16 %v930
        %v1126 = vunpack.c.l.b16 %v931
        %v1127 = vunpack.c.l.b16 %v932
        %v1128 = vunpack.c.l.b16 %v933
        %v1129 = vpack.c.b16 %v1126, %v1125
        %v1130 = vpack.c.b16 %v1128, %v1127
        %1133 = vmatprep.subr.bf16.mxu0 0
        %1134 = vmatpush1.bf16.msra.mxu0 %v1129
        %1135 = vmatprep.subr.bf16.mxu0 0
        %1136 = vmatpush1.bf16.msra.mxu0 %v1130
        %1137 = vmatprep.subr.bf16.mxu0 0
        %1138 = vmatpush1.bf16.msra.mxu0 0
        %1139 = vmatprep.subr.bf16.mxu0 0
        %1140 = vmatpush1.bf16.msra.mxu0 0
        %1141 = vmatprep.subr.bf16.mxu0 0
        %1142 = vmatpush1.bf16.msra.mxu0 0
        %1143 = vmatprep.subr.bf16.mxu0 0
        %1144 = vmatpush1.bf16.msra.mxu0 0
        %1145 = vmatprep.subr.bf16.mxu0 0
        %1146 = vmatpush1.bf16.msra.mxu0 0
        %1147 = vmatprep.subr.bf16.mxu0 0
        %1148 = vmatpush1.bf16.msra.mxu0 0
        %1149 = vmatprep.subr.bf16.mxu0 0
        %1150 = vmatpush1.bf16.msra.mxu0 0
        %1151 = vmatprep.subr.bf16.mxu0 0
        %1152 = vmatpush1.bf16.msra.mxu0 0
        %1153 = vmatprep.subr.bf16.mxu0 0
        %1154 = vmatpush1.bf16.msra.mxu0 0
        %1155 = vmatprep.subr.bf16.mxu0 0
        %1156 = vmatpush1.bf16.msra.mxu0 0
        %1157 = vmatprep.subr.bf16.mxu0 0
        %1158 = vmatpush1.bf16.msra.mxu0 0
        %1159 = vmatprep.subr.bf16.mxu0 0
        %1160 = vmatpush1.bf16.msra.mxu0 0
        %1161 = vmatprep.subr.bf16.mxu0 0
        %1162 = vmatpush1.bf16.msra.mxu0 0
        %1163 = vmatprep.subr.bf16.mxu0 0
        %1164 = vmatpush1.bf16.msra.mxu0 0
        %1165 = vmatprep.mubr.bf16.mxu0 0
        %1166 = vmatmul.mubr.bf16.gmra.mrb[0].mxu0 %v975
        %v1167 = vpop.f32.mrb[0].mxu0
        %v1168 = vadd.f32 %v957, %v1167
        %v1169 = vpop.f32.mrb[0].mxu0
        %v1170 = vpop.f32.mrb[0].mxu0
        %v1171 = vpop.f32.mrb[0].mxu0
        %1172 = vdwg.mxu0
        %v1173 = vld [vmem:[#allocation13] sm:$0xf]
        %v1174 = vld [vmem:[#allocation13 + $0x4] sm:$0xf]
        %v1175 = vld [vmem:[#allocation13 + $0x8] sm:$0xf]
        %v1176 = vld [vmem:[#allocation13 + $0xc] sm:$0xf]
        %v1177 = vld [vmem:[#allocation13 + $0x10] sm:$0xf]
        %v1178 = vld [vmem:[#allocation13 + $0x14] sm:$0xf]
        %v1179 = vld [vmem:[#allocation13 + $0x18] sm:$0xf]
        %v1180 = vld [vmem:[#allocation13 + $0x1c] sm:$0xf]
        %v1181 = vld [vmem:[#allocation13 + $0x20] sm:$0xf]
        %v1182 = vld [vmem:[#allocation13 + $0x24] sm:$0xf]
        %v1183 = vld [vmem:[#allocation13 + $0x28] sm:$0xf]
        %v1184 = vld [vmem:[#allocation13 + $0x2c] sm:$0xf]
        %v1185 = vld [vmem:[#allocation13 + $0x30] sm:$0xf]
        %v1186 = vld [vmem:[#allocation13 + $0x34] sm:$0xf]
        %v1187 = vld [vmem:[#allocation13 + $0x38] sm:$0xf]
        %v1188 = vld [vmem:[#allocation13 + $0x3c] sm:$0xf]
        %v1189 = vld [vmem:[#allocation14] sm:$0x1]
        %v1190 = vld [vmem:[#allocation14 + $0x1] sm:$0x1]
        %v1191 = vld [vmem:[#allocation14 + $0x2] sm:$0x1]
        %v1192 = vld [vmem:[#allocation14 + $0x3] sm:$0x1]
        %v1197 = vlaneseq
        %v1198 = vshrl.u32 %v1197, 7
        %v1199 = vsub.s32 0, %v1198
        %v1200 = vrot.slane %v1189, %v1199
        %v1201 = vlaneseq
        %v1202 = vshrl.u32 %v1201, 7
        %v1203 = vsub.s32 0, %v1202
        %v1204 = vrot.slane %v1190, %v1203
        %v1205 = vlaneseq
        %v1206 = vshrl.u32 %v1205, 7
        %v1207 = vsub.s32 0, %v1206
        %v1208 = vrot.slane %v1191, %v1207
        %v1209 = vlaneseq
        %v1210 = vshrl.u32 %v1209, 7
        %v1211 = vsub.s32 0, %v1210
        %v1212 = vrot.slane %v1192, %v1211
        %v1221 = vunpack.c.l.b16 %v1173
        %v1222 = vunpack.c.l.b16 %v1174
        %v1223 = vunpack.c.l.b16 %v1175
        %v1224 = vunpack.c.l.b16 %v1176
        %v1225 = vpack.c.b16 %v1222, %v1221
        %v1226 = vpack.c.b16 %v1224, %v1223
        %v1230 = vsel %vm868, %v917, 0
        %1232 = vmatprep.subr.bf16.mxu0 0
        %1233 = vmatpush1.bf16.msra.mxu0 %v1225
        %1234 = vmatprep.subr.bf16.mxu0 0
        %1235 = vmatpush1.bf16.msra.mxu0 %v1226
        %1236 = vmatprep.subr.bf16.mxu0 0
        %1237 = vmatpush1.bf16.msra.mxu0 0
        %1238 = vmatprep.subr.bf16.mxu0 0
        %1239 = vmatpush1.bf16.msra.mxu0 0
        %1240 = vmatprep.subr.bf16.mxu0 0
        %1241 = vmatpush1.bf16.msra.mxu0 0
        %1242 = vmatprep.subr.bf16.mxu0 0
        %1243 = vmatpush1.bf16.msra.mxu0 0
        %1244 = vmatprep.subr.bf16.mxu0 0
        %1245 = vmatpush1.bf16.msra.mxu0 0
        %1246 = vmatprep.subr.bf16.mxu0 0
        %1247 = vmatpush1.bf16.msra.mxu0 0
        %1248 = vmatprep.subr.bf16.mxu0 0
        %1249 = vmatpush1.bf16.msra.mxu0 0
        %1250 = vmatprep.subr.bf16.mxu0 0
        %1251 = vmatpush1.bf16.msra.mxu0 0
        %1252 = vmatprep.subr.bf16.mxu0 0
        %1253 = vmatpush1.bf16.msra.mxu0 0
        %1254 = vmatprep.subr.bf16.mxu0 0
        %1255 = vmatpush1.bf16.msra.mxu0 0
        %1256 = vmatprep.subr.bf16.mxu0 0
        %1257 = vmatpush1.bf16.msra.mxu0 0
        %1258 = vmatprep.subr.bf16.mxu0 0
        %1259 = vmatpush1.bf16.msra.mxu0 0
        %1260 = vmatprep.subr.bf16.mxu0 0
        %1261 = vmatpush1.bf16.msra.mxu0 0
        %1262 = vmatprep.subr.bf16.mxu0 0
        %1263 = vmatpush1.bf16.msra.mxu0 0
        %1264 = vmatprep.mubr.bf16.mxu0 0
        %1265 = vmatmul.mubr.bf16.gmra.mrb[0].mxu0 %v1230
        %v1266 = vpop.f32.mrb[0].mxu0
        %v1267 = vadd.f32 %v1200, %v1266
        %v1268 = vpop.f32.mrb[0].mxu0
        %v1269 = vpop.f32.mrb[0].mxu0
        %v1270 = vpop.f32.mrb[0].mxu0
        %1271 = vdwg.mxu0
        %v1276 = vunpack.c.l.b16 %v1177
        %v1277 = vunpack.c.l.b16 %v1178
        %v1278 = vunpack.c.l.b16 %v1179
        %v1279 = vunpack.c.l.b16 %v1180
        %v1280 = vpack.c.b16 %v1277, %v1276
        %v1281 = vpack.c.b16 %v1279, %v1278
        %1284 = vmatprep.subr.bf16.mxu0 0
        %1285 = vmatpush1.bf16.msra.mxu0 %v1280
        %1286 = vmatprep.subr.bf16.mxu0 0
        %1287 = vmatpush1.bf16.msra.mxu0 %v1281
        %1288 = vmatprep.subr.bf16.mxu0 0
        %1289 = vmatpush1.bf16.msra.mxu0 0
        %1290 = vmatprep.subr.bf16.mxu0 0
        %1291 = vmatpush1.bf16.msra.mxu0 0
        %1292 = vmatprep.subr.bf16.mxu0 0
        %1293 = vmatpush1.bf16.msra.mxu0 0
        %1294 = vmatprep.subr.bf16.mxu0 0
        %1295 = vmatpush1.bf16.msra.mxu0 0
        %1296 = vmatprep.subr.bf16.mxu0 0
        %1297 = vmatpush1.bf16.msra.mxu0 0
        %1298 = vmatprep.subr.bf16.mxu0 0
        %1299 = vmatpush1.bf16.msra.mxu0 0
        %1300 = vmatprep.subr.bf16.mxu0 0
        %1301 = vmatpush1.bf16.msra.mxu0 0
        %1302 = vmatprep.subr.bf16.mxu0 0
        %1303 = vmatpush1.bf16.msra.mxu0 0
        %1304 = vmatprep.subr.bf16.mxu0 0
        %1305 = vmatpush1.bf16.msra.mxu0 0
        %1306 = vmatprep.subr.bf16.mxu0 0
        %1307 = vmatpush1.bf16.msra.mxu0 0
        %1308 = vmatprep.subr.bf16.mxu0 0
        %1309 = vmatpush1.bf16.msra.mxu0 0
        %1310 = vmatprep.subr.bf16.mxu0 0
        %1311 = vmatpush1.bf16.msra.mxu0 0
        %1312 = vmatprep.subr.bf16.mxu0 0
        %1313 = vmatpush1.bf16.msra.mxu0 0
        %1314 = vmatprep.subr.bf16.mxu0 0
        %1315 = vmatpush1.bf16.msra.mxu0 0
        %1316 = vmatprep.mubr.bf16.mxu0 0
        %1317 = vmatmul.mubr.bf16.gmra.mrb[0].mxu0 %v1230
        %v1318 = vpop.f32.mrb[0].mxu0
        %v1319 = vadd.f32 %v1204, %v1318
        %v1320 = vpop.f32.mrb[0].mxu0
        %v1321 = vpop.f32.mrb[0].mxu0
        %v1322 = vpop.f32.mrb[0].mxu0
        %1323 = vdwg.mxu0
        %v1328 = vunpack.c.l.b16 %v1181
        %v1329 = vunpack.c.l.b16 %v1182
        %v1330 = vunpack.c.l.b16 %v1183
        %v1331 = vunpack.c.l.b16 %v1184
        %v1332 = vpack.c.b16 %v1329, %v1328
        %v1333 = vpack.c.b16 %v1331, %v1330
        %1336 = vmatprep.subr.bf16.mxu0 0
        %1337 = vmatpush1.bf16.msra.mxu0 %v1332
        %1338 = vmatprep.subr.bf16.mxu0 0
        %1339 = vmatpush1.bf16.msra.mxu0 %v1333
        %1340 = vmatprep.subr.bf16.mxu0 0
        %1341 = vmatpush1.bf16.msra.mxu0 0
        %1342 = vmatprep.subr.bf16.mxu0 0
        %1343 = vmatpush1.bf16.msra.mxu0 0
        %1344 = vmatprep.subr.bf16.mxu0 0
        %1345 = vmatpush1.bf16.msra.mxu0 0
        %1346 = vmatprep.subr.bf16.mxu0 0
        %1347 = vmatpush1.bf16.msra.mxu0 0
        %1348 = vmatprep.subr.bf16.mxu0 0
        %1349 = vmatpush1.bf16.msra.mxu0 0
        %1350 = vmatprep.subr.bf16.mxu0 0
        %1351 = vmatpush1.bf16.msra.mxu0 0
        %1352 = vmatprep.subr.bf16.mxu0 0
        %1353 = vmatpush1.bf16.msra.mxu0 0
        %1354 = vmatprep.subr.bf16.mxu0 0
        %1355 = vmatpush1.bf16.msra.mxu0 0
        %1356 = vmatprep.subr.bf16.mxu0 0
        %1357 = vmatpush1.bf16.msra.mxu0 0
        %1358 = vmatprep.subr.bf16.mxu0 0
        %1359 = vmatpush1.bf16.msra.mxu0 0
        %1360 = vmatprep.subr.bf16.mxu0 0
        %1361 = vmatpush1.bf16.msra.mxu0 0
        %1362 = vmatprep.subr.bf16.mxu0 0
        %1363 = vmatpush1.bf16.msra.mxu0 0
        %1364 = vmatprep.subr.bf16.mxu0 0
        %1365 = vmatpush1.bf16.msra.mxu0 0
        %1366 = vmatprep.subr.bf16.mxu0 0
        %1367 = vmatpush1.bf16.msra.mxu0 0
        %1368 = vmatprep.mubr.bf16.mxu0 0
        %1369 = vmatmul.mubr.bf16.gmra.mrb[0].mxu0 %v1230
        %v1370 = vpop.f32.mrb[0].mxu0
        %v1371 = vadd.f32 %v1208, %v1370
        %v1372 = vpop.f32.mrb[0].mxu0
        %v1373 = vpop.f32.mrb[0].mxu0
        %v1374 = vpop.f32.mrb[0].mxu0
        %1375 = vdwg.mxu0
        %v1380 = vunpack.c.l.b16 %v1185
        %v1381 = vunpack.c.l.b16 %v1186
        %v1382 = vunpack.c.l.b16 %v1187
        %v1383 = vunpack.c.l.b16 %v1188
        %v1384 = vpack.c.b16 %v1381, %v1380
        %v1385 = vpack.c.b16 %v1383, %v1382
        %1388 = vmatprep.subr.bf16.mxu0 0
        %1389 = vmatpush1.bf16.msra.mxu0 %v1384
        %1390 = vmatprep.subr.bf16.mxu0 0
        %1391 = vmatpush1.bf16.msra.mxu0 %v1385
        %1392 = vmatprep.subr.bf16.mxu0 0
        %1393 = vmatpush1.bf16.msra.mxu0 0
        %1394 = vmatprep.subr.bf16.mxu0 0
        %1395 = vmatpush1.bf16.msra.mxu0 0
        %1396 = vmatprep.subr.bf16.mxu0 0
        %1397 = vmatpush1.bf16.msra.mxu0 0
        %1398 = vmatprep.subr.bf16.mxu0 0
        %1399 = vmatpush1.bf16.msra.mxu0 0
        %1400 = vmatprep.subr.bf16.mxu0 0
        %1401 = vmatpush1.bf16.msra.mxu0 0
        %1402 = vmatprep.subr.bf16.mxu0 0
        %1403 = vmatpush1.bf16.msra.mxu0 0
        %1404 = vmatprep.subr.bf16.mxu0 0
        %1405 = vmatpush1.bf16.msra.mxu0 0
        %1406 = vmatprep.subr.bf16.mxu0 0
        %1407 = vmatpush1.bf16.msra.mxu0 0
        %1408 = vmatprep.subr.bf16.mxu0 0
        %1409 = vmatpush1.bf16.msra.mxu0 0
        %1410 = vmatprep.subr.bf16.mxu0 0
        %1411 = vmatpush1.bf16.msra.mxu0 0
        %1412 = vmatprep.subr.bf16.mxu0 0
        %1413 = vmatpush1.bf16.msra.mxu0 0
        %1414 = vmatprep.subr.bf16.mxu0 0
        %1415 = vmatpush1.bf16.msra.mxu0 0
        %1416 = vmatprep.subr.bf16.mxu0 0
        %1417 = vmatpush1.bf16.msra.mxu0 0
        %1418 = vmatprep.subr.bf16.mxu0 0
        %1419 = vmatpush1.bf16.msra.mxu0 0
        %1420 = vmatprep.mubr.bf16.mxu0 0
        %1421 = vmatmul.mubr.bf16.gmra.mrb[0].mxu0 %v1230
        %v1422 = vpop.f32.mrb[0].mxu0
        %v1423 = vadd.f32 %v1212, %v1422
        %v1424 = vpop.f32.mrb[0].mxu0
        %v1425 = vpop.f32.mrb[0].mxu0
        %v1426 = vpop.f32.mrb[0].mxu0
        %1427 = vdwg.mxu0
        %v1428 = vld [vmem:[#allocation16] sm:$0xf]
        %v1429 = vld [vmem:[#allocation16 + $0x4] sm:$0xf]
        %v1430 = vld [vmem:[#allocation16 + $0x8] sm:$0xf]
        %v1431 = vld [vmem:[#allocation16 + $0xc] sm:$0xf]
        %v1432 = vld [vmem:[#allocation16 + $0x10] sm:$0xf]
        %v1433 = vld [vmem:[#allocation16 + $0x14] sm:$0xf]
        %v1434 = vld [vmem:[#allocation16 + $0x18] sm:$0xf]
        %v1435 = vld [vmem:[#allocation16 + $0x1c] sm:$0xf]
        %v1436 = vld [vmem:[#allocation16 + $0x20] sm:$0xf]
        %v1437 = vld [vmem:[#allocation16 + $0x24] sm:$0xf]
        %v1438 = vld [vmem:[#allocation16 + $0x28] sm:$0xf]
        %v1439 = vld [vmem:[#allocation16 + $0x2c] sm:$0xf]
        %v1440 = vld [vmem:[#allocation16 + $0x30] sm:$0xf]
        %v1441 = vld [vmem:[#allocation16 + $0x34] sm:$0xf]
        %v1442 = vld [vmem:[#allocation16 + $0x38] sm:$0xf]
        %v1443 = vld [vmem:[#allocation16 + $0x3c] sm:$0xf]
        %v1444 = vld [vmem:[#allocation17] sm:$0x1]
        %v1445 = vld [vmem:[#allocation17 + $0x1] sm:$0x1]
        %v1446 = vld [vmem:[#allocation17 + $0x2] sm:$0x1]
        %v1447 = vld [vmem:[#allocation17 + $0x3] sm:$0x1]
        %v1452 = vlaneseq
        %v1453 = vshrl.u32 %v1452, 7
        %v1454 = vsub.s32 0, %v1453
        %v1455 = vrot.slane %v1444, %v1454
        %v1456 = vlaneseq
        %v1457 = vshrl.u32 %v1456, 7
        %v1458 = vsub.s32 0, %v1457
        %v1459 = vrot.slane %v1445, %v1458
        %v1460 = vlaneseq
        %v1461 = vshrl.u32 %v1460, 7
        %v1462 = vsub.s32 0, %v1461
        %v1463 = vrot.slane %v1446, %v1462
        %v1464 = vlaneseq
        %v1465 = vshrl.u32 %v1464, 7
        %v1466 = vsub.s32 0, %v1465
        %v1467 = vrot.slane %v1447, %v1466
        %v1476 = vunpack.c.l.b16 %v1428
        %v1477 = vunpack.c.l.b16 %v1429
        %v1478 = vunpack.c.l.b16 %v1430
        %v1479 = vunpack.c.l.b16 %v1431
        %v1480 = vpack.c.b16 %v1477, %v1476
        %v1481 = vpack.c.b16 %v1479, %v1478
        %1484 = vmatprep.subr.bf16.mxu0 0
        %1485 = vmatpush1.bf16.msra.mxu0 %v1480
        %1486 = vmatprep.subr.bf16.mxu0 0
        %1487 = vmatpush1.bf16.msra.mxu0 %v1481
        %1488 = vmatprep.subr.bf16.mxu0 0
        %1489 = vmatpush1.bf16.msra.mxu0 0
        %1490 = vmatprep.subr.bf16.mxu0 0
        %1491 = vmatpush1.bf16.msra.mxu0 0
        %1492 = vmatprep.subr.bf16.mxu0 0
        %1493 = vmatpush1.bf16.msra.mxu0 0
        %1494 = vmatprep.subr.bf16.mxu0 0
        %1495 = vmatpush1.bf16.msra.mxu0 0
        %1496 = vmatprep.subr.bf16.mxu0 0
        %1497 = vmatpush1.bf16.msra.mxu0 0
        %1498 = vmatprep.subr.bf16.mxu0 0
        %1499 = vmatpush1.bf16.msra.mxu0 0
        %1500 = vmatprep.subr.bf16.mxu0 0
        %1501 = vmatpush1.bf16.msra.mxu0 0
        %1502 = vmatprep.subr.bf16.mxu0 0
        %1503 = vmatpush1.bf16.msra.mxu0 0
        %1504 = vmatprep.subr.bf16.mxu0 0
        %1505 = vmatpush1.bf16.msra.mxu0 0
        %1506 = vmatprep.subr.bf16.mxu0 0
        %1507 = vmatpush1.bf16.msra.mxu0 0
        %1508 = vmatprep.subr.bf16.mxu0 0
        %1509 = vmatpush1.bf16.msra.mxu0 0
        %1510 = vmatprep.subr.bf16.mxu0 0
        %1511 = vmatpush1.bf16.msra.mxu0 0
        %1512 = vmatprep.subr.bf16.mxu0 0
        %1513 = vmatpush1.bf16.msra.mxu0 0
        %1514 = vmatprep.subr.bf16.mxu0 0
        %1515 = vmatpush1.bf16.msra.mxu0 0
        %1516 = vmatprep.mubr.bf16.mxu0 0
        %1517 = vmatmul.mubr.bf16.gmra.mrb[0].mxu0 %v1230
        %v1518 = vpop.f32.mrb[0].mxu0
        %v1519 = vadd.f32 %v1455, %v1518
        %v1520 = vpop.f32.mrb[0].mxu0
        %v1521 = vpop.f32.mrb[0].mxu0
        %v1522 = vpop.f32.mrb[0].mxu0
        %1523 = vdwg.mxu0
        %v1528 = vunpack.c.l.b16 %v1432
        %v1529 = vunpack.c.l.b16 %v1433
        %v1530 = vunpack.c.l.b16 %v1434
        %v1531 = vunpack.c.l.b16 %v1435
        %v1532 = vpack.c.b16 %v1529, %v1528
        %v1533 = vpack.c.b16 %v1531, %v1530
        %1536 = vmatprep.subr.bf16.mxu0 0
        %1537 = vmatpush1.bf16.msra.mxu0 %v1532
        %1538 = vmatprep.subr.bf16.mxu0 0
        %1539 = vmatpush1.bf16.msra.mxu0 %v1533
        %1540 = vmatprep.subr.bf16.mxu0 0
        %1541 = vmatpush1.bf16.msra.mxu0 0
        %1542 = vmatprep.subr.bf16.mxu0 0
        %1543 = vmatpush1.bf16.msra.mxu0 0
        %1544 = vmatprep.subr.bf16.mxu0 0
        %1545 = vmatpush1.bf16.msra.mxu0 0
        %1546 = vmatprep.subr.bf16.mxu0 0
        %1547 = vmatpush1.bf16.msra.mxu0 0
        %1548 = vmatprep.subr.bf16.mxu0 0
        %1549 = vmatpush1.bf16.msra.mxu0 0
        %1550 = vmatprep.subr.bf16.mxu0 0
        %1551 = vmatpush1.bf16.msra.mxu0 0
        %1552 = vmatprep.subr.bf16.mxu0 0
        %1553 = vmatpush1.bf16.msra.mxu0 0
        %1554 = vmatprep.subr.bf16.mxu0 0
        %1555 = vmatpush1.bf16.msra.mxu0 0
        %1556 = vmatprep.subr.bf16.mxu0 0
        %1557 = vmatpush1.bf16.msra.mxu0 0
        %1558 = vmatprep.subr.bf16.mxu0 0
        %1559 = vmatpush1.bf16.msra.mxu0 0
        %1560 = vmatprep.subr.bf16.mxu0 0
        %1561 = vmatpush1.bf16.msra.mxu0 0
        %1562 = vmatprep.subr.bf16.mxu0 0
        %1563 = vmatpush1.bf16.msra.mxu0 0
        %1564 = vmatprep.subr.bf16.mxu0 0
        %1565 = vmatpush1.bf16.msra.mxu0 0
        %1566 = vmatprep.subr.bf16.mxu0 0
        %1567 = vmatpush1.bf16.msra.mxu0 0
        %1568 = vmatprep.mubr.bf16.mxu0 0
        %1569 = vmatmul.mubr.bf16.gmra.mrb[0].mxu0 %v1230
        %v1570 = vpop.f32.mrb[0].mxu0
        %v1571 = vadd.f32 %v1459, %v1570
        %v1572 = vpop.f32.mrb[0].mxu0
        %v1573 = vpop.f32.mrb[0].mxu0
        %v1574 = vpop.f32.mrb[0].mxu0
        %1575 = vdwg.mxu0
        %v1580 = vunpack.c.l.b16 %v1436
        %v1581 = vunpack.c.l.b16 %v1437
        %v1582 = vunpack.c.l.b16 %v1438
        %v1583 = vunpack.c.l.b16 %v1439
        %v1584 = vpack.c.b16 %v1581, %v1580
        %v1585 = vpack.c.b16 %v1583, %v1582
        %1588 = vmatprep.subr.bf16.mxu0 0
        %1589 = vmatpush1.bf16.msra.mxu0 %v1584
        %1590 = vmatprep.subr.bf16.mxu0 0
        %1591 = vmatpush1.bf16.msra.mxu0 %v1585
        %1592 = vmatprep.subr.bf16.mxu0 0
        %1593 = vmatpush1.bf16.msra.mxu0 0
        %1594 = vmatprep.subr.bf16.mxu0 0
        %1595 = vmatpush1.bf16.msra.mxu0 0
        %1596 = vmatprep.subr.bf16.mxu0 0
        %1597 = vmatpush1.bf16.msra.mxu0 0
        %1598 = vmatprep.subr.bf16.mxu0 0
        %1599 = vmatpush1.bf16.msra.mxu0 0
        %1600 = vmatprep.subr.bf16.mxu0 0
        %1601 = vmatpush1.bf16.msra.mxu0 0
        %1602 = vmatprep.subr.bf16.mxu0 0
        %1603 = vmatpush1.bf16.msra.mxu0 0
        %1604 = vmatprep.subr.bf16.mxu0 0
        %1605 = vmatpush1.bf16.msra.mxu0 0
        %1606 = vmatprep.subr.bf16.mxu0 0
        %1607 = vmatpush1.bf16.msra.mxu0 0
        %1608 = vmatprep.subr.bf16.mxu0 0
        %1609 = vmatpush1.bf16.msra.mxu0 0
        %1610 = vmatprep.subr.bf16.mxu0 0
        %1611 = vmatpush1.bf16.msra.mxu0 0
        %1612 = vmatprep.subr.bf16.mxu0 0
        %1613 = vmatpush1.bf16.msra.mxu0 0
        %1614 = vmatprep.subr.bf16.mxu0 0
        %1615 = vmatpush1.bf16.msra.mxu0 0
        %1616 = vmatprep.subr.bf16.mxu0 0
        %1617 = vmatpush1.bf16.msra.mxu0 0
        %1618 = vmatprep.subr.bf16.mxu0 0
        %1619 = vmatpush1.bf16.msra.mxu0 0
        %1620 = vmatprep.mubr.bf16.mxu0 0
        %1621 = vmatmul.mubr.bf16.gmra.mrb[0].mxu0 %v1230
        %v1622 = vpop.f32.mrb[0].mxu0
        %v1623 = vadd.f32 %v1463, %v1622
        %v1624 = vpop.f32.mrb[0].mxu0
        %v1625 = vpop.f32.mrb[0].mxu0
        %v1626 = vpop.f32.mrb[0].mxu0
        %1627 = vdwg.mxu0
        %v1632 = vunpack.c.l.b16 %v1440
        %v1633 = vunpack.c.l.b16 %v1441
        %v1634 = vunpack.c.l.b16 %v1442
        %v1635 = vunpack.c.l.b16 %v1443
        %v1636 = vpack.c.b16 %v1633, %v1632
        %v1637 = vpack.c.b16 %v1635, %v1634
        %1640 = vmatprep.subr.bf16.mxu0 0
        %1641 = vmatpush1.bf16.msra.mxu0 %v1636
        %1642 = vmatprep.subr.bf16.mxu0 0
        %1643 = vmatpush1.bf16.msra.mxu0 %v1637
        %1644 = vmatprep.subr.bf16.mxu0 0
        %1645 = vmatpush1.bf16.msra.mxu0 0
        %1646 = vmatprep.subr.bf16.mxu0 0
        %1647 = vmatpush1.bf16.msra.mxu0 0
        %1648 = vmatprep.subr.bf16.mxu0 0
        %1649 = vmatpush1.bf16.msra.mxu0 0
        %1650 = vmatprep.subr.bf16.mxu0 0
        %1651 = vmatpush1.bf16.msra.mxu0 0
        %1652 = vmatprep.subr.bf16.mxu0 0
        %1653 = vmatpush1.bf16.msra.mxu0 0
        %1654 = vmatprep.subr.bf16.mxu0 0
        %1655 = vmatpush1.bf16.msra.mxu0 0
        %1656 = vmatprep.subr.bf16.mxu0 0
        %1657 = vmatpush1.bf16.msra.mxu0 0
        %1658 = vmatprep.subr.bf16.mxu0 0
        %1659 = vmatpush1.bf16.msra.mxu0 0
        %1660 = vmatprep.subr.bf16.mxu0 0
        %1661 = vmatpush1.bf16.msra.mxu0 0
        %1662 = vmatprep.subr.bf16.mxu0 0
        %1663 = vmatpush1.bf16.msra.mxu0 0
        %1664 = vmatprep.subr.bf16.mxu0 0
        %1665 = vmatpush1.bf16.msra.mxu0 0
        %1666 = vmatprep.subr.bf16.mxu0 0
        %1667 = vmatpush1.bf16.msra.mxu0 0
        %1668 = vmatprep.subr.bf16.mxu0 0
        %1669 = vmatpush1.bf16.msra.mxu0 0
        %1670 = vmatprep.subr.bf16.mxu0 0
        %1671 = vmatpush1.bf16.msra.mxu0 0
        %1672 = vmatprep.mubr.bf16.mxu0 0
        %1673 = vmatmul.mubr.bf16.gmra.mrb[0].mxu0 %v1230
        %v1674 = vpop.f32.mrb[0].mxu0
        %v1675 = vadd.f32 %v1467, %v1674
        %v1676 = vpop.f32.mrb[0].mxu0
        %v1677 = vpop.f32.mrb[0].mxu0
        %v1678 = vpop.f32.mrb[0].mxu0
        %1679 = vdwg.mxu0
        %v1680 = vpack.c.bf16 %v1012, %v1012
        %v1681 = vpack.c.bf16 %v1064, %v1064
        %v1682 = vpack.c.bf16 %v1116, %v1116
        %v1683 = vpack.c.bf16 %v1168, %v1168
        %v1684 = vpack.c.bf16 %v1267, %v1267
        %v1685 = vpack.c.bf16 %v1319, %v1319
        %v1686 = vpack.c.bf16 %v1371, %v1371
        %v1687 = vpack.c.bf16 %v1423, %v1423
        %vm1688 = vcmask 64512
        %v1690 = vsel %vm1688, %v1680, 0
        %v1693 = vsel %vm1688, %v1684, 0
        %1695 = vmatprep.subr.bf16.mxu0 0
        %1696 = vmatpush1.bf16.xpose.msra.mxu0 %v1693
        %1697 = vmatprep.subr.bf16.mxu0 0
        %1698 = vmatpush1.bf16.xpose.msra.mxu0 0
        %1699 = vmatprep.subr.bf16.mxu0 0
        %1700 = vmatpush1.bf16.xpose.msra.mxu0 0
        %1701 = vmatprep.subr.bf16.mxu0 0
        %1702 = vmatpush1.bf16.xpose.msra.mxu0 0
        %1703 = vmatprep.subr.bf16.mxu0 0
        %1704 = vmatpush1.bf16.xpose.msra.mxu0 0
        %1705 = vmatprep.subr.bf16.mxu0 0
        %1706 = vmatpush1.bf16.xpose.msra.mxu0 0
        %1707 = vmatprep.subr.bf16.mxu0 0
        %1708 = vmatpush1.bf16.xpose.msra.mxu0 0
        %1709 = vmatprep.subr.bf16.mxu0 0
        %1710 = vmatpush1.bf16.xpose.msra.mxu0 0
        %1711 = vmatprep.subr.bf16.mxu0 0
        %1712 = vmatpush1.bf16.xpose.msra.mxu0 0
        %1713 = vmatprep.subr.bf16.mxu0 0
        %1714 = vmatpush1.bf16.xpose.msra.mxu0 0
        %1715 = vmatprep.subr.bf16.mxu0 0
        %1716 = vmatpush1.bf16.xpose.msra.mxu0 0
        %1717 = vmatprep.subr.bf16.mxu0 0
        %1718 = vmatpush1.bf16.xpose.msra.mxu0 0
        %1719 = vmatprep.subr.bf16.mxu0 0
        %1720 = vmatpush1.bf16.xpose.msra.mxu0 0
        %1721 = vmatprep.subr.bf16.mxu0 0
        %1722 = vmatpush1.bf16.xpose.msra.mxu0 0
        %1723 = vmatprep.subr.bf16.mxu0 0
        %1724 = vmatpush1.bf16.xpose.msra.mxu0 0
        %1725 = vmatprep.subr.bf16.mxu0 0
        %1726 = vmatpush1.bf16.xpose.msra.mxu0 0
        %1727 = vmatprep.mubr.bf16.mxu0 0
        %1728 = vmatmul.mubr.bf16.gmra.mrb[0].mxu0 %v1690
        %v1729 = vpop.f32.mrb[0].mxu0
        %v1730 = vadd.f32 0.0, %v1729
        %v1731 = vpop.f32.mrb[0].mxu0
        %v1732 = vpop.f32.mrb[0].mxu0
        %v1733 = vpop.f32.mrb[0].mxu0
        %1734 = vdwg.mxu0
        %v1736 = vsel %vm1688, %v1681, 0
        %v1739 = vsel %vm1688, %v1685, 0
        %1741 = vmatprep.subr.bf16.mxu0 0
        %1742 = vmatpush1.bf16.xpose.msra.mxu0 %v1739
        %1743 = vmatprep.subr.bf16.mxu0 0
        %1744 = vmatpush1.bf16.xpose.msra.mxu0 0
        %1745 = vmatprep.subr.bf16.mxu0 0
        %1746 = vmatpush1.bf16.xpose.msra.mxu0 0
        %1747 = vmatprep.subr.bf16.mxu0 0
        %1748 = vmatpush1.bf16.xpose.msra.mxu0 0
        %1749 = vmatprep.subr.bf16.mxu0 0
        %1750 = vmatpush1.bf16.xpose.msra.mxu0 0
        %1751 = vmatprep.subr.bf16.mxu0 0
        %1752 = vmatpush1.bf16.xpose.msra.mxu0 0
        %1753 = vmatprep.subr.bf16.mxu0 0
        %1754 = vmatpush1.bf16.xpose.msra.mxu0 0
        %1755 = vmatprep.subr.bf16.mxu0 0
        %1756 = vmatpush1.bf16.xpose.msra.mxu0 0
        %1757 = vmatprep.subr.bf16.mxu0 0
        %1758 = vmatpush1.bf16.xpose.msra.mxu0 0
        %1759 = vmatprep.subr.bf16.mxu0 0
        %1760 = vmatpush1.bf16.xpose.msra.mxu0 0
        %1761 = vmatprep.subr.bf16.mxu0 0
        %1762 = vmatpush1.bf16.xpose.msra.mxu0 0
        %1763 = vmatprep.subr.bf16.mxu0 0
        %1764 = vmatpush1.bf16.xpose.msra.mxu0 0
        %1765 = vmatprep.subr.bf16.mxu0 0
        %1766 = vmatpush1.bf16.xpose.msra.mxu0 0
        %1767 = vmatprep.subr.bf16.mxu0 0
        %1768 = vmatpush1.bf16.xpose.msra.mxu0 0
        %1769 = vmatprep.subr.bf16.mxu0 0
        %1770 = vmatpush1.bf16.xpose.msra.mxu0 0
        %1771 = vmatprep.subr.bf16.mxu0 0
        %1772 = vmatpush1.bf16.xpose.msra.mxu0 0
        %1773 = vmatprep.mubr.bf16.mxu0 0
        %1774 = vmatmul.mubr.bf16.gmra.mrb[0].mxu0 %v1736
        %v1775 = vpop.f32.mrb[0].mxu0
        %v1776 = vadd.f32 0.0, %v1775
        %v1777 = vpop.f32.mrb[0].mxu0
        %v1778 = vpop.f32.mrb[0].mxu0
        %v1779 = vpop.f32.mrb[0].mxu0
        %1780 = vdwg.mxu0
        %v1782 = vsel %vm1688, %v1682, 0
        %v1785 = vsel %vm1688, %v1686, 0
        %1787 = vmatprep.subr.bf16.mxu0 0
        %1788 = vmatpush1.bf16.xpose.msra.mxu0 %v1785
        %1789 = vmatprep.subr.bf16.mxu0 0
        %1790 = vmatpush1.bf16.xpose.msra.mxu0 0
        %1791 = vmatprep.subr.bf16.mxu0 0
        %1792 = vmatpush1.bf16.xpose.msra.mxu0 0
        %1793 = vmatprep.subr.bf16.mxu0 0
        %1794 = vmatpush1.bf16.xpose.msra.mxu0 0
        %1795 = vmatprep.subr.bf16.mxu0 0
        %1796 = vmatpush1.bf16.xpose.msra.mxu0 0
        %1797 = vmatprep.subr.bf16.mxu0 0
        %1798 = vmatpush1.bf16.xpose.msra.mxu0 0
        %1799 = vmatprep.subr.bf16.mxu0 0
        %1800 = vmatpush1.bf16.xpose.msra.mxu0 0
        %1801 = vmatprep.subr.bf16.mxu0 0
        %1802 = vmatpush1.bf16.xpose.msra.mxu0 0
        %1803 = vmatprep.subr.bf16.mxu0 0
        %1804 = vmatpush1.bf16.xpose.msra.mxu0 0
        %1805 = vmatprep.subr.bf16.mxu0 0
        %1806 = vmatpush1.bf16.xpose.msra.mxu0 0
        %1807 = vmatprep.subr.bf16.mxu0 0
        %1808 = vmatpush1.bf16.xpose.msra.mxu0 0
        %1809 = vmatprep.subr.bf16.mxu0 0
        %1810 = vmatpush1.bf16.xpose.msra.mxu0 0
        %1811 = vmatprep.subr.bf16.mxu0 0
        %1812 = vmatpush1.bf16.xpose.msra.mxu0 0
        %1813 = vmatprep.subr.bf16.mxu0 0
        %1814 = vmatpush1.bf16.xpose.msra.mxu0 0
        %1815 = vmatprep.subr.bf16.mxu0 0
        %1816 = vmatpush1.bf16.xpose.msra.mxu0 0
        %1817 = vmatprep.subr.bf16.mxu0 0
        %1818 = vmatpush1.bf16.xpose.msra.mxu0 0
        %1819 = vmatprep.mubr.bf16.mxu0 0
        %1820 = vmatmul.mubr.bf16.gmra.mrb[0].mxu0 %v1782
        %v1821 = vpop.f32.mrb[0].mxu0
        %v1822 = vadd.f32 0.0, %v1821
        %v1823 = vpop.f32.mrb[0].mxu0
        %v1824 = vpop.f32.mrb[0].mxu0
        %v1825 = vpop.f32.mrb[0].mxu0
        %1826 = vdwg.mxu0
        %v1828 = vsel %vm1688, %v1683, 0
        %v1831 = vsel %vm1688, %v1687, 0
        %1833 = vmatprep.subr.bf16.mxu0 0
        %1834 = vmatpush1.bf16.xpose.msra.mxu0 %v1831
        %1835 = vmatprep.subr.bf16.mxu0 0
        %1836 = vmatpush1.bf16.xpose.msra.mxu0 0
        %1837 = vmatprep.subr.bf16.mxu0 0
        %1838 = vmatpush1.bf16.xpose.msra.mxu0 0
        %1839 = vmatprep.subr.bf16.mxu0 0
        %1840 = vmatpush1.bf16.xpose.msra.mxu0 0
        %1841 = vmatprep.subr.bf16.mxu0 0
        %1842 = vmatpush1.bf16.xpose.msra.mxu0 0
        %1843 = vmatprep.subr.bf16.mxu0 0
        %1844 = vmatpush1.bf16.xpose.msra.mxu0 0
        %1845 = vmatprep.subr.bf16.mxu0 0
        %1846 = vmatpush1.bf16.xpose.msra.mxu0 0
        %1847 = vmatprep.subr.bf16.mxu0 0
        %1848 = vmatpush1.bf16.xpose.msra.mxu0 0
        %1849 = vmatprep.subr.bf16.mxu0 0
        %1850 = vmatpush1.bf16.xpose.msra.mxu0 0
        %1851 = vmatprep.subr.bf16.mxu0 0
        %1852 = vmatpush1.bf16.xpose.msra.mxu0 0
        %1853 = vmatprep.subr.bf16.mxu0 0
        %1854 = vmatpush1.bf16.xpose.msra.mxu0 0
        %1855 = vmatprep.subr.bf16.mxu0 0
        %1856 = vmatpush1.bf16.xpose.msra.mxu0 0
        %1857 = vmatprep.subr.bf16.mxu0 0
        %1858 = vmatpush1.bf16.xpose.msra.mxu0 0
        %1859 = vmatprep.subr.bf16.mxu0 0
        %1860 = vmatpush1.bf16.xpose.msra.mxu0 0
        %1861 = vmatprep.subr.bf16.mxu0 0
        %1862 = vmatpush1.bf16.xpose.msra.mxu0 0
        %1863 = vmatprep.subr.bf16.mxu0 0
        %1864 = vmatpush1.bf16.xpose.msra.mxu0 0
        %1865 = vmatprep.mubr.bf16.mxu0 0
        %1866 = vmatmul.mubr.bf16.gmra.mrb[0].mxu0 %v1828
        %v1867 = vpop.f32.mrb[0].mxu0
        %v1868 = vadd.f32 0.0, %v1867
        %v1869 = vpop.f32.mrb[0].mxu0
        %v1870 = vpop.f32.mrb[0].mxu0
        %v1871 = vpop.f32.mrb[0].mxu0
        %1872 = vdwg.mxu0
        %v1873 = vmul.f32 %v1730, 0.35355338
        %v1874 = vmul.f32 %v1776, 0.35355338
        %v1875 = vmul.f32 %v1822, 0.35355338
        %v1876 = vmul.f32 %v1868, 0.35355338
        %v1877 = vsel %vm1688, %v1873, -inf
        %1878 = vmax.xlane.f32.xlu0 %v1877
        %v1879 = vpop.xlane.xlu0 %1878
        %v1880 = vsel %vm1688, %v1874, -inf
        %1881 = vmax.xlane.f32.xlu0 %v1880
        %v1882 = vpop.xlane.xlu0 %1881
        %v1883 = vsel %vm1688, %v1875, -inf
        %1884 = vmax.xlane.f32.xlu0 %v1883
        %v1885 = vpop.xlane.xlu0 %1884
        %v1886 = vsel %vm1688, %v1876, -inf
        %1887 = vmax.xlane.f32.xlu0 %v1886
        %v1888 = vpop.xlane.xlu0 %1887
        %v1889 = vsub.f32 %v1873, %v1879
        %v1890 = vsub.f32 %v1874, %v1882
        %v1891 = vsub.f32 %v1875, %v1885
        %v1892 = vsub.f32 %v1876, %v1888
        %v1893 = vmul.f32 %v1889, 1.442695
        %v1894 = vpow.pop %v1893
        %v1895 = vmul.f32 %v1890, 1.442695
        %v1896 = vpow.pop %v1895
        %v1897 = vmul.f32 %v1891, 1.442695
        %v1898 = vpow.pop %v1897
        %v1899 = vmul.f32 %v1892, 1.442695
        %v1900 = vpow.pop %v1899
        %v1901 = vsel %vm1688, %v1894, 0.0
        %1902 = vadd.xlane.f32.xlu0 %v1901
        %v1903 = vpop.xlane.xlu0 %1902
        %v1904 = vsel %vm1688, %v1896, 0.0
        %1905 = vadd.xlane.f32.xlu0 %v1904
        %v1906 = vpop.xlane.xlu0 %1905
        %v1907 = vsel %vm1688, %v1898, 0.0
        %1908 = vadd.xlane.f32.xlu0 %v1907
        %v1909 = vpop.xlane.xlu0 %1908
        %v1910 = vsel %vm1688, %v1900, 0.0
        %1911 = vadd.xlane.f32.xlu0 %v1910
        %v1912 = vpop.xlane.xlu0 %1911
        %v1913 = vrcp.pop %v1903
        %v1914 = vrcp.pop %v1906
        %v1915 = vrcp.pop %v1909
        %v1916 = vrcp.pop %v1912
        %v1917 = vmul.f32 %v1894, %v1913
        %v1918 = vmul.f32 %v1896, %v1914
        %v1919 = vmul.f32 %v1898, %v1915
        %v1920 = vmul.f32 %v1900, %v1916
        %v1921 = vpack.c.bf16 %v1917, %v1917
        %v1922 = vpack.c.bf16 %v1918, %v1918
        %v1923 = vpack.c.bf16 %v1919, %v1919
        %v1924 = vpack.c.bf16 %v1920, %v1920
        %v1925 = vpack.c.bf16 %v1519, %v1519
        %v1926 = vpack.c.bf16 %v1571, %v1571
        %v1927 = vpack.c.bf16 %v1623, %v1623
        %v1928 = vpack.c.bf16 %v1675, %v1675
        %v1930 = vsel %vm1688, %v1921, 0
        %vm1932 = vcmask 1043456
        %v1934 = vsel %vm1932, %v1925, 0
        %1936 = vmatprep.subr.bf16.mxu0 0
        %1937 = vmatpush1.bf16.msra.mxu0 %v1934
        %1938 = vmatprep.subr.bf16.mxu0 0
        %1939 = vmatpush1.bf16.msra.mxu0 0
        %1940 = vmatprep.subr.bf16.mxu0 0
        %1941 = vmatpush1.bf16.msra.mxu0 0
        %1942 = vmatprep.subr.bf16.mxu0 0
        %1943 = vmatpush1.bf16.msra.mxu0 0
        %1944 = vmatprep.subr.bf16.mxu0 0
        %1945 = vmatpush1.bf16.msra.mxu0 0
        %1946 = vmatprep.subr.bf16.mxu0 0
        %1947 = vmatpush1.bf16.msra.mxu0 0
        %1948 = vmatprep.subr.bf16.mxu0 0
        %1949 = vmatpush1.bf16.msra.mxu0 0
        %1950 = vmatprep.subr.bf16.mxu0 0
        %1951 = vmatpush1.bf16.msra.mxu0 0
        %1952 = vmatprep.subr.bf16.mxu0 0
        %1953 = vmatpush1.bf16.msra.mxu0 0
        %1954 = vmatprep.subr.bf16.mxu0 0
        %1955 = vmatpush1.bf16.msra.mxu0 0
        %1956 = vmatprep.subr.bf16.mxu0 0
        %1957 = vmatpush1.bf16.msra.mxu0 0
        %1958 = vmatprep.subr.bf16.mxu0 0
        %1959 = vmatpush1.bf16.msra.mxu0 0
        %1960 = vmatprep.subr.bf16.mxu0 0
        %1961 = vmatpush1.bf16.msra.mxu0 0
        %1962 = vmatprep.subr.bf16.mxu0 0
        %1963 = vmatpush1.bf16.msra.mxu0 0
        %1964 = vmatprep.subr.bf16.mxu0 0
        %1965 = vmatpush1.bf16.msra.mxu0 0
        %1966 = vmatprep.subr.bf16.mxu0 0
        %1967 = vmatpush1.bf16.msra.mxu0 0
        %1968 = vmatprep.mubr.bf16.mxu0 0
        %1969 = vmatmul.mubr.bf16.gmra.mrb[0].mxu0 %v1930
        %v1970 = vpop.f32.mrb[0].mxu0
        %v1971 = vadd.f32 0.0, %v1970
        %v1972 = vpop.f32.mrb[0].mxu0
        %v1973 = vpop.f32.mrb[0].mxu0
        %v1974 = vpop.f32.mrb[0].mxu0
        %1975 = vdwg.mxu0
        %v1977 = vsel %vm1688, %v1922, 0
        %v1980 = vsel %vm1932, %v1926, 0
        %1982 = vmatprep.subr.bf16.mxu0 0
        %1983 = vmatpush1.bf16.msra.mxu0 %v1980
        %1984 = vmatprep.subr.bf16.mxu0 0
        %1985 = vmatpush1.bf16.msra.mxu0 0
        %1986 = vmatprep.subr.bf16.mxu0 0
        %1987 = vmatpush1.bf16.msra.mxu0 0
        %1988 = vmatprep.subr.bf16.mxu0 0
        %1989 = vmatpush1.bf16.msra.mxu0 0
        %1990 = vmatprep.subr.bf16.mxu0 0
        %1991 = vmatpush1.bf16.msra.mxu0 0
        %1992 = vmatprep.subr.bf16.mxu0 0
        %1993 = vmatpush1.bf16.msra.mxu0 0
        %1994 = vmatprep.subr.bf16.mxu0 0
        %1995 = vmatpush1.bf16.msra.mxu0 0
        %1996 = vmatprep.subr.bf16.mxu0 0
        %1997 = vmatpush1.bf16.msra.mxu0 0
        %1998 = vmatprep.subr.bf16.mxu0 0
        %1999 = vmatpush1.bf16.msra.mxu0 0
        %2000 = vmatprep.subr.bf16.mxu0 0
        %2001 = vmatpush1.bf16.msra.mxu0 0
        %2002 = vmatprep.subr.bf16.mxu0 0
        %2003 = vmatpush1.bf16.msra.mxu0 0
        %2004 = vmatprep.subr.bf16.mxu0 0
        %2005 = vmatpush1.bf16.msra.mxu0 0
        %2006 = vmatprep.subr.bf16.mxu0 0
        %2007 = vmatpush1.bf16.msra.mxu0 0
        %2008 = vmatprep.subr.bf16.mxu0 0
        %2009 = vmatpush1.bf16.msra.mxu0 0
        %2010 = vmatprep.subr.bf16.mxu0 0
        %2011 = vmatpush1.bf16.msra.mxu0 0
        %2012 = vmatprep.subr.bf16.mxu0 0
        %2013 = vmatpush1.bf16.msra.mxu0 0
        %2014 = vmatprep.mubr.bf16.mxu0 0
        %2015 = vmatmul.mubr.bf16.gmra.mrb[0].mxu0 %v1977
        %v2016 = vpop.f32.mrb[0].mxu0
        %v2017 = vadd.f32 0.0, %v2016
        %v2018 = vpop.f32.mrb[0].mxu0
        %v2019 = vpop.f32.mrb[0].mxu0
        %v2020 = vpop.f32.mrb[0].mxu0
        %2021 = vdwg.mxu0
        %v2023 = vsel %vm1688, %v1923, 0
        %v2026 = vsel %vm1932, %v1927, 0
        %2028 = vmatprep.subr.bf16.mxu0 0
        %2029 = vmatpush1.bf16.msra.mxu0 %v2026
        %2030 = vmatprep.subr.bf16.mxu0 0
        %2031 = vmatpush1.bf16.msra.mxu0 0
        %2032 = vmatprep.subr.bf16.mxu0 0
        %2033 = vmatpush1.bf16.msra.mxu0 0
        %2034 = vmatprep.subr.bf16.mxu0 0
        %2035 = vmatpush1.bf16.msra.mxu0 0
        %2036 = vmatprep.subr.bf16.mxu0 0
        %2037 = vmatpush1.bf16.msra.mxu0 0
        %2038 = vmatprep.subr.bf16.mxu0 0
        %2039 = vmatpush1.bf16.msra.mxu0 0
        %2040 = vmatprep.subr.bf16.mxu0 0
        %2041 = vmatpush1.bf16.msra.mxu0 0
        %2042 = vmatprep.subr.bf16.mxu0 0
        %2043 = vmatpush1.bf16.msra.mxu0 0
        %2044 = vmatprep.subr.bf16.mxu0 0
        %2045 = vmatpush1.bf16.msra.mxu0 0
        %2046 = vmatprep.subr.bf16.mxu0 0
        %2047 = vmatpush1.bf16.msra.mxu0 0
        %2048 = vmatprep.subr.bf16.mxu0 0
        %2049 = vmatpush1.bf16.msra.mxu0 0
        %2050 = vmatprep.subr.bf16.mxu0 0
        %2051 = vmatpush1.bf16.msra.mxu0 0
        %2052 = vmatprep.subr.bf16.mxu0 0
        %2053 = vmatpush1.bf16.msra.mxu0 0
        %2054 = vmatprep.subr.bf16.mxu0 0
        %2055 = vmatpush1.bf16.msra.mxu0 0
        %2056 = vmatprep.subr.bf16.mxu0 0
        %2057 = vmatpush1.bf16.msra.mxu0 0
        %2058 = vmatprep.subr.bf16.mxu0 0
        %2059 = vmatpush1.bf16.msra.mxu0 0
        %2060 = vmatprep.mubr.bf16.mxu0 0
        %2061 = vmatmul.mubr.bf16.gmra.mrb[0].mxu0 %v2023
        %v2062 = vpop.f32.mrb[0].mxu0
        %v2063 = vadd.f32 0.0, %v2062
        %v2064 = vpop.f32.mrb[0].mxu0
        %v2065 = vpop.f32.mrb[0].mxu0
        %v2066 = vpop.f32.mrb[0].mxu0
        %2067 = vdwg.mxu0
        %v2069 = vsel %vm1688, %v1924, 0
        %v2072 = vsel %vm1932, %v1928, 0
        %2074 = vmatprep.subr.bf16.mxu0 0
        %2075 = vmatpush1.bf16.msra.mxu0 %v2072
        %2076 = vmatprep.subr.bf16.mxu0 0
        %2077 = vmatpush1.bf16.msra.mxu0 0
        %2078 = vmatprep.subr.bf16.mxu0 0
        %2079 = vmatpush1.bf16.msra.mxu0 0
        %2080 = vmatprep.subr.bf16.mxu0 0
        %2081 = vmatpush1.bf16.msra.mxu0 0
        %2082 = vmatprep.subr.bf16.mxu0 0
        %2083 = vmatpush1.bf16.msra.mxu0 0
        %2084 = vmatprep.subr.bf16.mxu0 0
        %2085 = vmatpush1.bf16.msra.mxu0 0
        %2086 = vmatprep.subr.bf16.mxu0 0
        %2087 = vmatpush1.bf16.msra.mxu0 0
        %2088 = vmatprep.subr.bf16.mxu0 0
        %2089 = vmatpush1.bf16.msra.mxu0 0
        %2090 = vmatprep.subr.bf16.mxu0 0
        %2091 = vmatpush1.bf16.msra.mxu0 0
        %2092 = vmatprep.subr.bf16.mxu0 0
        %2093 = vmatpush1.bf16.msra.mxu0 0
        %2094 = vmatprep.subr.bf16.mxu0 0
        %2095 = vmatpush1.bf16.msra.mxu0 0
        %2096 = vmatprep.subr.bf16.mxu0 0
        %2097 = vmatpush1.bf16.msra.mxu0 0
        %2098 = vmatprep.subr.bf16.mxu0 0
        %2099 = vmatpush1.bf16.msra.mxu0 0
        %2100 = vmatprep.subr.bf16.mxu0 0
        %2101 = vmatpush1.bf16.msra.mxu0 0
        %2102 = vmatprep.subr.bf16.mxu0 0
        %2103 = vmatpush1.bf16.msra.mxu0 0
        %2104 = vmatprep.subr.bf16.mxu0 0
        %2105 = vmatpush1.bf16.msra.mxu0 0
        %2106 = vmatprep.mubr.bf16.mxu0 0
        %2107 = vmatmul.mubr.bf16.gmra.mrb[0].mxu0 %v2069
        %v2108 = vpop.f32.mrb[0].mxu0
        %v2109 = vadd.f32 0.0, %v2108
        %v2110 = vpop.f32.mrb[0].mxu0
        %v2111 = vpop.f32.mrb[0].mxu0
        %v2112 = vpop.f32.mrb[0].mxu0
        %2113 = vdwg.mxu0
        %v2114 = vpack.c.bf16 %v1971, %v1971
        %v2115 = vpack.c.bf16 %v2017, %v2017
        %v2116 = vpack.c.bf16 %v2063, %v2063
        %v2117 = vpack.c.bf16 %v2109, %v2109
        %v2118 = vld [vmem:[#allocation19] sm:$0xf]
        %v2119 = vld [vmem:[#allocation19 + $0x4] sm:$0xf]
        %v2120 = vld [vmem:[#allocation19 + $0x8] sm:$0xf]
        %v2121 = vld [vmem:[#allocation19 + $0xc] sm:$0xf]
        %v2123 = vsel %vm1688, %v2114, 0
        %v2126 = vsel %vm1932, %v2118, 0
        %2128 = vmatprep.subr.bf16.mxu0 0
        %2129 = vmatpush1.bf16.msra.mxu0 %v2126
        %2130 = vmatprep.subr.bf16.mxu0 0
        %2131 = vmatpush1.bf16.msra.mxu0 0
        %2132 = vmatprep.subr.bf16.mxu0 0
        %2133 = vmatpush1.bf16.msra.mxu0 0
        %2134 = vmatprep.subr.bf16.mxu0 0
        %2135 = vmatpush1.bf16.msra.mxu0 0
        %2136 = vmatprep.subr.bf16.mxu0 0
        %2137 = vmatpush1.bf16.msra.mxu0 0
        %2138 = vmatprep.subr.bf16.mxu0 0
        %2139 = vmatpush1.bf16.msra.mxu0 0
        %2140 = vmatprep.subr.bf16.mxu0 0
        %2141 = vmatpush1.bf16.msra.mxu0 0
        %2142 = vmatprep.subr.bf16.mxu0 0
        %2143 = vmatpush1.bf16.msra.mxu0 0
        %2144 = vmatprep.subr.bf16.mxu0 0
        %2145 = vmatpush1.bf16.msra.mxu0 0
        %2146 = vmatprep.subr.bf16.mxu0 0
        %2147 = vmatpush1.bf16.msra.mxu0 0
        %2148 = vmatprep.subr.bf16.mxu0 0
        %2149 = vmatpush1.bf16.msra.mxu0 0
        %2150 = vmatprep.subr.bf16.mxu0 0
        %2151 = vmatpush1.bf16.msra.mxu0 0
        %2152 = vmatprep.subr.bf16.mxu0 0
        %2153 = vmatpush1.bf16.msra.mxu0 0
        %2154 = vmatprep.subr.bf16.mxu0 0
        %2155 = vmatpush1.bf16.msra.mxu0 0
        %2156 = vmatprep.subr.bf16.mxu0 0
        %2157 = vmatpush1.bf16.msra.mxu0 0
        %2158 = vmatprep.subr.bf16.mxu0 0
        %2159 = vmatpush1.bf16.msra.mxu0 0
        %2160 = vmatprep.mubr.bf16.mxu0 0
        %2161 = vmatmul.mubr.bf16.gmra.mrb[0].mxu0 %v2123
        %v2162 = vpop.f32.mrb[0].mxu0
        %v2163 = vadd.f32 0.0, %v2162
        %v2164 = vpop.f32.mrb[0].mxu0
        %v2165 = vpop.f32.mrb[0].mxu0
        %v2166 = vpop.f32.mrb[0].mxu0
        %2167 = vdwg.mxu0
        %v2169 = vsel %vm1688, %v2115, 0
        %v2172 = vsel %vm1932, %v2119, 0
        %2174 = vmatprep.subr.bf16.mxu0 0
        %2175 = vmatpush1.bf16.msra.mxu0 %v2172
        %2176 = vmatprep.subr.bf16.mxu0 0
        %2177 = vmatpush1.bf16.msra.mxu0 0
        %2178 = vmatprep.subr.bf16.mxu0 0
        %2179 = vmatpush1.bf16.msra.mxu0 0
        %2180 = vmatprep.subr.bf16.mxu0 0
        %2181 = vmatpush1.bf16.msra.mxu0 0
        %2182 = vmatprep.subr.bf16.mxu0 0
        %2183 = vmatpush1.bf16.msra.mxu0 0
        %2184 = vmatprep.subr.bf16.mxu0 0
        %2185 = vmatpush1.bf16.msra.mxu0 0
        %2186 = vmatprep.subr.bf16.mxu0 0
        %2187 = vmatpush1.bf16.msra.mxu0 0
        %2188 = vmatprep.subr.bf16.mxu0 0
        %2189 = vmatpush1.bf16.msra.mxu0 0
        %2190 = vmatprep.subr.bf16.mxu0 0
        %2191 = vmatpush1.bf16.msra.mxu0 0
        %2192 = vmatprep.subr.bf16.mxu0 0
        %2193 = vmatpush1.bf16.msra.mxu0 0
        %2194 = vmatprep.subr.bf16.mxu0 0
        %2195 = vmatpush1.bf16.msra.mxu0 0
        %2196 = vmatprep.subr.bf16.mxu0 0
        %2197 = vmatpush1.bf16.msra.mxu0 0
        %2198 = vmatprep.subr.bf16.mxu0 0
        %2199 = vmatpush1.bf16.msra.mxu0 0
        %2200 = vmatprep.subr.bf16.mxu0 0
        %2201 = vmatpush1.bf16.msra.mxu0 0
        %2202 = vmatprep.subr.bf16.mxu0 0
        %2203 = vmatpush1.bf16.msra.mxu0 0
        %2204 = vmatprep.subr.bf16.mxu0 0
        %2205 = vmatpush1.bf16.msra.mxu0 0
        %2206 = vmatprep.mubr.bf16.mxu0 0
        %2207 = vmatmul.mubr.bf16.gmra.mrb[0].mxu0 %v2169
        %v2208 = vpop.f32.mrb[0].mxu0
        %v2209 = vadd.f32 0.0, %v2208
        %v2210 = vpop.f32.mrb[0].mxu0
        %v2211 = vpop.f32.mrb[0].mxu0
        %v2212 = vpop.f32.mrb[0].mxu0
        %2213 = vdwg.mxu0
        %v2215 = vsel %vm1688, %v2116, 0
        %v2218 = vsel %vm1932, %v2120, 0
        %2220 = vmatprep.subr.bf16.mxu0 0
        %2221 = vmatpush1.bf16.msra.mxu0 %v2218
        %2222 = vmatprep.subr.bf16.mxu0 0
        %2223 = vmatpush1.bf16.msra.mxu0 0
        %2224 = vmatprep.subr.bf16.mxu0 0
        %2225 = vmatpush1.bf16.msra.mxu0 0
        %2226 = vmatprep.subr.bf16.mxu0 0
        %2227 = vmatpush1.bf16.msra.mxu0 0
        %2228 = vmatprep.subr.bf16.mxu0 0
        %2229 = vmatpush1.bf16.msra.mxu0 0
        %2230 = vmatprep.subr.bf16.mxu0 0
        %2231 = vmatpush1.bf16.msra.mxu0 0
        %2232 = vmatprep.subr.bf16.mxu0 0
        %2233 = vmatpush1.bf16.msra.mxu0 0
        %2234 = vmatprep.subr.bf16.mxu0 0
        %2235 = vmatpush1.bf16.msra.mxu0 0
        %2236 = vmatprep.subr.bf16.mxu0 0
        %2237 = vmatpush1.bf16.msra.mxu0 0
        %2238 = vmatprep.subr.bf16.mxu0 0
        %2239 = vmatpush1.bf16.msra.mxu0 0
        %2240 = vmatprep.subr.bf16.mxu0 0
        %2241 = vmatpush1.bf16.msra.mxu0 0
        %2242 = vmatprep.subr.bf16.mxu0 0
        %2243 = vmatpush1.bf16.msra.mxu0 0
        %2244 = vmatprep.subr.bf16.mxu0 0
        %2245 = vmatpush1.bf16.msra.mxu0 0
        %2246 = vmatprep.subr.bf16.mxu0 0
        %2247 = vmatpush1.bf16.msra.mxu0 0
        %2248 = vmatprep.subr.bf16.mxu0 0
        %2249 = vmatpush1.bf16.msra.mxu0 0
        %2250 = vmatprep.subr.bf16.mxu0 0
        %2251 = vmatpush1.bf16.msra.mxu0 0
        %2252 = vmatprep.mubr.bf16.mxu0 0
        %2253 = vmatmul.mubr.bf16.gmra.mrb[0].mxu0 %v2215
        %v2254 = vpop.f32.mrb[0].mxu0
        %v2255 = vadd.f32 0.0, %v2254
        %v2256 = vpop.f32.mrb[0].mxu0
        %v2257 = vpop.f32.mrb[0].mxu0
        %v2258 = vpop.f32.mrb[0].mxu0
        %2259 = vdwg.mxu0
        %v2261 = vsel %vm1688, %v2117, 0
        %v2264 = vsel %vm1932, %v2121, 0
        %2266 = vmatprep.subr.bf16.mxu0 0
        %2267 = vmatpush1.bf16.msra.mxu0 %v2264
        %2268 = vmatprep.subr.bf16.mxu0 0
        %2269 = vmatpush1.bf16.msra.mxu0 0
        %2270 = vmatprep.subr.bf16.mxu0 0
        %2271 = vmatpush1.bf16.msra.mxu0 0
        %2272 = vmatprep.subr.bf16.mxu0 0
        %2273 = vmatpush1.bf16.msra.mxu0 0
        %2274 = vmatprep.subr.bf16.mxu0 0
        %2275 = vmatpush1.bf16.msra.mxu0 0
        %2276 = vmatprep.subr.bf16.mxu0 0
        %2277 = vmatpush1.bf16.msra.mxu0 0
        %2278 = vmatprep.subr.bf16.mxu0 0
        %2279 = vmatpush1.bf16.msra.mxu0 0
        %2280 = vmatprep.subr.bf16.mxu0 0
        %2281 = vmatpush1.bf16.msra.mxu0 0
        %2282 = vmatprep.subr.bf16.mxu0 0
        %2283 = vmatpush1.bf16.msra.mxu0 0
        %2284 = vmatprep.subr.bf16.mxu0 0
        %2285 = vmatpush1.bf16.msra.mxu0 0
        %2286 = vmatprep.subr.bf16.mxu0 0
        %2287 = vmatpush1.bf16.msra.mxu0 0
        %2288 = vmatprep.subr.bf16.mxu0 0
        %2289 = vmatpush1.bf16.msra.mxu0 0
        %2290 = vmatprep.subr.bf16.mxu0 0
        %2291 = vmatpush1.bf16.msra.mxu0 0
        %2292 = vmatprep.subr.bf16.mxu0 0
        %2293 = vmatpush1.bf16.msra.mxu0 0
        %2294 = vmatprep.subr.bf16.mxu0 0
        %2295 = vmatpush1.bf16.msra.mxu0 0
        %2296 = vmatprep.subr.bf16.mxu0 0
        %2297 = vmatpush1.bf16.msra.mxu0 0
        %2298 = vmatprep.mubr.bf16.mxu0 0
        %2299 = vmatmul.mubr.bf16.gmra.mrb[0].mxu0 %v2261
        %v2300 = vpop.f32.mrb[0].mxu0
        %v2301 = vadd.f32 0.0, %v2300
        %v2302 = vpop.f32.mrb[0].mxu0
        %v2303 = vpop.f32.mrb[0].mxu0
        %v2304 = vpop.f32.mrb[0].mxu0
        %2305 = vdwg.mxu0
        %v2306 = vsel %vm868, %v2163, 0.0
        %v2307 = vsel %vm868, %v2209, 0.0
        %v2308 = vadd.f32 %v2306, %v2307
        %v2309 = vsel %vm868, %v2255, 0.0
        %v2310 = vadd.f32 %v2308, %v2309
        %v2311 = vsel %vm868, %v2301, 0.0
        %v2312 = vadd.f32 %v2310, %v2311
        %v2313 = vld [vmem:[#allocation20] sm:$0x1]
        %v2315 = vlaneseq
        %v2316 = vshrl.u32 %v2315, 7
        %v2317 = vsub.s32 0, %v2316
        %v2318 = vrot.slane %v2313, %v2317
        %v2320 = vadd.f32 %v2312, %v2318
        %v2321 = vadd.f32 %v864, %v2320
        %v2322 = vld [vmem:[#allocation22] sm:$0x1]
        %v2323 = vld [vmem:[#allocation23] sm:$0x1]
        %v2324 = vsel %vm868, %v2321, 0.0
        %2325 = vadd.xlane.f32.xlu0 %v2324
        %v2326 = vpop.xlane.xlu0 %2325
        %v2327 = vmul.f32 %v2326, %v872
        %v2328 = vmul.f32 %v2321, %v2321
        %v2329 = vsel %vm868, %v2328, 0.0
        %2330 = vadd.xlane.f32.xlu0 %v2329
        %v2331 = vpop.xlane.xlu0 %2330
        %v2332 = vmul.f32 %v2331, %v872
        %v2333 = vmul.f32 %v2327, %v2327
        %v2334 = vsub.f32 %v2332, %v2333
        %v2335 = vsub.f32 %v2321, %v2327
        %v2336 = vadd.f32 %v2334, 1e-05
        %v2337 = vrsqrt.pop %v2336
        %v2338 = vmul.f32 %v2335, %v2337
        %v2340 = vlaneseq
        %v2341 = vshrl.u32 %v2340, 7
        %v2342 = vsub.s32 0, %v2341
        %v2343 = vrot.slane %v2322, %v2342
        %v2345 = vmul.f32 %v2338, %v2343
        %v2347 = vlaneseq
        %v2348 = vshrl.u32 %v2347, 7
        %v2349 = vsub.s32 0, %v2348
        %v2350 = vrot.slane %v2323, %v2349
        %v2352 = vadd.f32 %v2345, %v2350
        %v2353 = vpack.c.bf16 %v2352, %v2352
        %v2354 = vld [vmem:[#allocation25] sm:$0xf]
        %v2355 = vld [vmem:[#allocation25 + $0x4] sm:$0xf]
        %v2356 = vld [vmem:[#allocation25 + $0x8] sm:$0xf]
        %v2357 = vld [vmem:[#allocation25 + $0xc] sm:$0xf]
        %v2358 = vld [vmem:[#allocation26] sm:$0x1]
        %v2360 = vlaneseq
        %v2361 = vshrl.u32 %v2360, 7
        %v2362 = vsub.s32 0, %v2361
        %v2363 = vrot.slane %v2358, %v2362
        %v2369 = vunpack.c.l.b16 %v2354
        %v2370 = vunpack.c.l.b16 %v2355
        %v2371 = vunpack.c.l.b16 %v2356
        %v2372 = vunpack.c.l.b16 %v2357
        %v2373 = vpack.c.b16 %v2370, %v2369
        %v2374 = vpack.c.b16 %v2372, %v2371
        %v2378 = vsel %vm868, %v2353, 0
        %2380 = vmatprep.subr.bf16.mxu0 0
        %2381 = vmatpush1.bf16.msra.mxu0 %v2373
        %2382 = vmatprep.subr.bf16.mxu0 0
        %2383 = vmatpush1.bf16.msra.mxu0 %v2374
        %2384 = vmatprep.subr.bf16.mxu0 0
        %2385 = vmatpush1.bf16.msra.mxu0 0
        %2386 = vmatprep.subr.bf16.mxu0 0
        %2387 = vmatpush1.bf16.msra.mxu0 0
        %2388 = vmatprep.subr.bf16.mxu0 0
        %2389 = vmatpush1.bf16.msra.mxu0 0
        %2390 = vmatprep.subr.bf16.mxu0 0
        %2391 = vmatpush1.bf16.msra.mxu0 0
        %2392 = vmatprep.subr.bf16.mxu0 0
        %2393 = vmatpush1.bf16.msra.mxu0 0
        %2394 = vmatprep.subr.bf16.mxu0 0
        %2395 = vmatpush1.bf16.msra.mxu0 0
        %2396 = vmatprep.subr.bf16.mxu0 0
        %2397 = vmatpush1.bf16.msra.mxu0 0
        %2398 = vmatprep.subr.bf16.mxu0 0
        %2399 = vmatpush1.bf16.msra.mxu0 0
        %2400 = vmatprep.subr.bf16.mxu0 0
        %2401 = vmatpush1.bf16.msra.mxu0 0
        %2402 = vmatprep.subr.bf16.mxu0 0
        %2403 = vmatpush1.bf16.msra.mxu0 0
        %2404 = vmatprep.subr.bf16.mxu0 0
        %2405 = vmatpush1.bf16.msra.mxu0 0
        %2406 = vmatprep.subr.bf16.mxu0 0
        %2407 = vmatpush1.bf16.msra.mxu0 0
        %2408 = vmatprep.subr.bf16.mxu0 0
        %2409 = vmatpush1.bf16.msra.mxu0 0
        %2410 = vmatprep.subr.bf16.mxu0 0
        %2411 = vmatpush1.bf16.msra.mxu0 0
        %2412 = vmatprep.mubr.bf16.mxu0 0
        %2413 = vmatmul.mubr.bf16.gmra.mrb[0].mxu0 %v2378
        %v2414 = vpop.f32.mrb[0].mxu0
        %v2415 = vadd.f32 %v2363, %v2414
        %v2416 = vpop.f32.mrb[0].mxu0
        %v2417 = vpop.f32.mrb[0].mxu0
        %v2418 = vpop.f32.mrb[0].mxu0
        %2419 = vdwg.mxu0
        %v2420 = vmul.f32 %v2415, 0.5
        %v2421 = vmul.f32 %v2415, 0.70710677
        %vm2422 = vcmp.ge.f32.partialorder %v2421, 0.0
        %v2423 = vsel %vm2422, 1.0, -1.0
        %v2424 = vand.u32 2147483647, %v2421
        %v2425 = vmul.f32 %v2424, 0.3275911
        %v2426 = vadd.f32 %v2425, 1.0
        %v2427 = vrcp.pop %v2426
        %v2428 = vmul.f32 1.0, %v2427
        %v2429 = vmul.f32 %v2428, 1.0614054
        %v2430 = vadd.f32 %v2429, -1.4531521
        %v2431 = vmul.f32 %v2430, %v2428
        %v2432 = vadd.f32 %v2431, 1.4214138
        %v2433 = vmul.f32 %v2432, %v2428
        %v2434 = vadd.f32 %v2433, -0.28449672
        %v2435 = vmul.f32 %v2434, %v2428
        %v2436 = vadd.f32 %v2435, 0.2548296
        %v2437 = vmul.f32 %v2436, %v2428
        %v2438 = vsub.f32 0.0, %v2424
        %v2439 = vmul.f32 %v2438, %v2424
        %v2440 = vmul.f32 %v2439, 1.442695
        %v2441 = vpow.pop %v2440
        %v2442 = vmul.f32 %v2437, %v2441
        %v2443 = vsub.f32 1.0, %v2442
        %v2444 = vmul.f32 %v2423, %v2443
        %v2445 = vadd.f32 %v2444, 1.0
        %v2446 = vmul.f32 %v2420, %v2445
        %v2447 = vpack.c.bf16 %v2446, %v2446
        %v2448 = vld [vmem:[#allocation28] sm:$0xf]
        %v2449 = vld [vmem:[#allocation28 + $0x4] sm:$0xf]
        %v2450 = vld [vmem:[#allocation28 + $0x8] sm:$0xf]
        %v2451 = vld [vmem:[#allocation28 + $0xc] sm:$0xf]
        %v2452 = vld [vmem:[#allocation28 + $0x10] sm:$0xf]
        %v2453 = vld [vmem:[#allocation28 + $0x14] sm:$0xf]
        %v2454 = vld [vmem:[#allocation28 + $0x18] sm:$0xf]
        %v2455 = vld [vmem:[#allocation28 + $0x1c] sm:$0xf]
        %v2456 = vld [vmem:[#allocation29] sm:$0x1]
        %v2458 = vlaneseq
        %v2459 = vshrl.u32 %v2458, 7
        %v2460 = vsub.s32 0, %v2459
        %v2461 = vrot.slane %v2456, %v2460
        %v2471 = vunpack.c.l.b16 %v2448
        %v2472 = vunpack.c.l.b16 %v2449
        %v2473 = vunpack.c.l.b16 %v2450
        %v2474 = vunpack.c.l.b16 %v2451
        %v2475 = vunpack.c.l.b16 %v2452
        %v2476 = vunpack.c.l.b16 %v2453
        %v2477 = vunpack.c.l.b16 %v2454
        %v2478 = vunpack.c.l.b16 %v2455
        %v2479 = vpack.c.b16 %v2472, %v2471
        %v2480 = vpack.c.b16 %v2474, %v2473
        %v2481 = vpack.c.b16 %v2476, %v2475
        %v2482 = vpack.c.b16 %v2478, %v2477
        %vm2487 = vcmask 523264
        %v2489 = vsel %vm2487, %v2447, 0
        %2491 = vmatprep.subr.bf16.mxu0 0
        %2492 = vmatpush1.bf16.msra.mxu0 %v2479
        %2493 = vmatprep.subr.bf16.mxu0 0
        %2494 = vmatpush1.bf16.msra.mxu0 %v2480
        %2495 = vmatprep.subr.bf16.mxu0 0
        %2496 = vmatpush1.bf16.msra.mxu0 %v2481
        %2497 = vmatprep.subr.bf16.mxu0 0
        %2498 = vmatpush1.bf16.msra.mxu0 %v2482
        %2499 = vmatprep.subr.bf16.mxu0 0
        %2500 = vmatpush1.bf16.msra.mxu0 0
        %2501 = vmatprep.subr.bf16.mxu0 0
        %2502 = vmatpush1.bf16.msra.mxu0 0
        %2503 = vmatprep.subr.bf16.mxu0 0
        %2504 = vmatpush1.bf16.msra.mxu0 0
        %2505 = vmatprep.subr.bf16.mxu0 0
        %2506 = vmatpush1.bf16.msra.mxu0 0
        %2507 = vmatprep.subr.bf16.mxu0 0
        %2508 = vmatpush1.bf16.msra.mxu0 0
        %2509 = vmatprep.subr.bf16.mxu0 0
        %2510 = vmatpush1.bf16.msra.mxu0 0
        %2511 = vmatprep.subr.bf16.mxu0 0
        %2512 = vmatpush1.bf16.msra.mxu0 0
        %2513 = vmatprep.subr.bf16.mxu0 0
        %2514 = vmatpush1.bf16.msra.mxu0 0
        %2515 = vmatprep.subr.bf16.mxu0 0
        %2516 = vmatpush1.bf16.msra.mxu0 0
        %2517 = vmatprep.subr.bf16.mxu0 0
        %2518 = vmatpush1.bf16.msra.mxu0 0
        %2519 = vmatprep.subr.bf16.mxu0 0
        %2520 = vmatpush1.bf16.msra.mxu0 0
        %2521 = vmatprep.subr.bf16.mxu0 0
        %2522 = vmatpush1.bf16.msra.mxu0 0
        %2523 = vmatprep.mubr.bf16.mxu0 0
        %2524 = vmatmul.mubr.bf16.gmra.mrb[0].mxu0 %v2489
        %v2525 = vpop.f32.mrb[0].mxu0
        %v2526 = vadd.f32 %v2461, %v2525
        %v2527 = vpop.f32.mrb[0].mxu0
        %v2528 = vpop.f32.mrb[0].mxu0
        %v2529 = vpop.f32.mrb[0].mxu0
        %2530 = vdwg.mxu0
        %v2531 = vadd.f32 %v2321, %v2526
        %2532 = vst.msk [vmem:[%s862] sm:$0xff] %vm868, %v2531
        %s2533 = sand.u32 %s458, 1
        %s2534 = scalar_lea.sflag [#allocation4], %s2533
        %s2535 = sand.u32 %s458, 1
        %s2536 = smul.addr %s2535, 8
        %s2537 = scalar_lea.vmem [#allocation31], %s2536
        // Predicated region
        $region165: #{tpu_custom_call.1} parent=91 // pred_check
          %p2538 = pneg %p468
        $region166: #{tpu_custom_call.1} parent=91 // pred_check_branch
          %2540 = sbr.rel (%p2538) target = $region168
        $region167: #{tpu_custom_call.1} parent=91 // pred_region
          %s2542 = ssub.s32 128, 128
          %2543 = vsyncadd %s2534, %s2542
          %s2544 = sadd.s32 %s51, %s50
          %s2545 = smul.addr %s2544, 128
          %s2546 = scalar_lea.hbm %s18, %s2545
          %s2548 = sshll.u32 %s2537, 4
          %s2549 = int_to_ptr.vmem [resolvable:$true] %s2548
          %2551 = dma.vmem_to_hbm [thread:$0]  %s2549, 128, %s2546, %s2534
        $region168: #{tpu_custom_call.1} parent=91 // pred_fallthru
          _
      $region92: #{tpu_custom_call.1} parent=5 // pred_fallthru
        _
      %p2552 = scmp.le.s32.totalorder 2, %s41
      // Predicated region
      $region169: #{tpu_custom_call.1} parent=5 // pred_check
        %p2553 = pneg %p2552
      $region170: #{tpu_custom_call.1} parent=5 // pred_check_branch
        %2555 = sbr.rel (%p2553) target = $region172
      $region171: #{tpu_custom_call.1} parent=5 // pred_region
        %s2556 = ssub.s32 %s41, 2
        // Predicated region
        $region173: #{tpu_custom_call.1} parent=171 // pred_check
          %p2557 = pneg %p474
        $region174: #{tpu_custom_call.1} parent=171 // pred_check_branch
          %2559 = sbr.rel (%p2557) target = $region176
        $region175: #{tpu_custom_call.1} parent=171 // pred_region
          %s2560 = sand.u32 %s459, 1
          %s2561 = scalar_lea.sflag [#allocation4], %s2560
          %s2562 = sand.u32 %s459, 1
          %s2563 = smul.addr %s2562, 8
          %s2564 = scalar_lea.vmem [#allocation31], %s2563
          %2565 = dma.done %s2561, 128
        $region176: #{tpu_custom_call.1} parent=171 // pred_fallthru
          _
      $region172: #{tpu_custom_call.1} parent=5 // pred_fallthru
        _
    $region6: #{tpu_custom_call.1} parent=1 // loop_footer
      %s45 = sadd.s32 1, %s41
    $region7: #{tpu_custom_call.1} parent=1 // loop_footer_branch
      %40 = sbr.rel target = $region3
    $region8: #{tpu_custom_call.1} parent=1 // loop_exit
      _
    %2566 = vsyncpa [#allocation3], 1
    %s2567 = scalar_lea.sflag [#allocation3], 1
    %2568 = vsyncpa %s2567, 1
    %2569 = vsyncpa [#allocation6], 1
    %s2570 = scalar_lea.sflag [#allocation6], 1
    %2571 = vsyncpa %s2570, 1
    %2572 = vsyncpa [#allocation9], 1
    %2573 = vsyncpa [#allocation12], 1
    %2574 = vsyncpa [#allocation15], 1
    %2575 = vsyncpa [#allocation18], 1
    %2576 = vsyncpa [#allocation21], 1
    %2577 = vsyncpa [#allocation24], 1
    %2578 = vsyncpa [#allocation27], 1
    %2579 = vsyncpa [#allocation30], 1
    %2580 = vsyncpa [#allocation4], 1
    %s2581 = scalar_lea.sflag [#allocation4], 1
    %2582 = vsyncpa %s2581, 1

</llo_original>
